<compile_context>
chip_gen: v5e
topology: v5e:2x2
jax: 0.10.0
libtpu: 0.0.40
codegen_flags: <defaults>
</compile_context>

<pallas_src>
import functools

import jax
import jax.numpy as jnp
from jax.experimental import pallas as pl
from jax.experimental.pallas import tpu as pltpu


def _round_up(x, m):
    return (x + m - 1) // m * m


def _multi_tc():
    # v7x has 2 TensorCores per chip -> prefer >=2 "parallel" grid steps.
    try:
        return "v7" in jax.devices()[0].device_kind.lower()
    except Exception:
        return False


_MIN_TILES = 2 if _multi_tc() else 1
_TM_CAP = 512               # v5e/v6e: big M tiles sit near the HBM roofline
_XLA_FALLBACK_ROWS = 32     # below this, pallas_call launch overhead dominates


# ----------------------------- Pallas kernels -----------------------------

def _mm_kernel(a_ref, b_ref, bias_ref, o_ref, *, post_act):
    """One M tile of: post_act(A @ B + bias), bf16 operands, f32 accumulate."""
    acc = jnp.dot(a_ref[...], b_ref[...], preferred_element_type=jnp.float32)
    acc = acc + bias_ref[...]
    if post_act == "tanh":                            # outermost nn.Tanh
        acc = jnp.tanh(acc)
    o_ref[...] = acc.astype(o_ref.dtype)


def _mm_stats_kernel(a_ref, b_ref, bias_ref, o_ref, s_ref, q_ref):
    """GEMM tile + free BatchNorm-stats epilogue (per-tile column sum/sumsq).

    bias is all-zero on BN'd convs (PyTorch uses bias=False there), and padded
    A rows are zero, so padded rows contribute nothing to the stats.
    """
    acc = jnp.dot(a_ref[...], b_ref[...], preferred_element_type=jnp.float32)
    acc = acc + bias_ref[...]
    o_ref[...] = acc.astype(o_ref.dtype)
    ps = jnp.sum(acc, axis=0, keepdims=True)          # (1, Np) f32
    pq = jnp.sum(acc * acc, axis=0, keepdims=True)
    # Replicate across the 8-row stats block (wrapper reads row 0 per tile).
    s_ref[...] = jnp.broadcast_to(ps, s_ref.shape)
    q_ref[...] = jnp.broadcast_to(pq, q_ref.shape)


def _choose_tiling(m_rows):
    mp8 = _round_up(m_rows, 8)
    tm = min(_TM_CAP, _round_up(-(-mp8 // _MIN_TILES), 8))
    mp = _round_up(mp8, tm)
    return tm, mp


def fused_matmul(a, b_packed, bias_row, *, post_act=None, emit_stats=False,
                 out_dtype=jnp.bfloat16):
    """post_act(A @ B + bias) on the MXU.

    Returns (out, stats): out is the row-padded (Mp, Np) result in out_dtype;
    stats is (col_sum, col_sumsq) over the true rows when emit_stats.
    """
    m_rows, k = a.shape
    kp, np_ = b_packed.shape
    a = a.astype(jnp.bfloat16)

    if _round_up(m_rows, 8) <= _XLA_FALLBACK_ROWS:
        # Innermost blocks (spatial 4x4 -> 1x1): plain XLA dot, no launch cost.
        a_k = jnp.pad(a, ((0, 0), (0, kp - k)))
        acc = jnp.dot(a_k, b_packed, preferred_element_type=jnp.float32)
        acc = acc + bias_row
        out = jnp.tanh(acc) if post_act == "tanh" else acc
        out = out.astype(out_dtype)
        if emit_stats:
            return out, (jnp.sum(acc, axis=0), jnp.sum(acc * acc, axis=0))
        return out, None

    tm, mp = _choose_tiling(m_rows)
    n_tiles = mp // tm
    a_p = jnp.pad(a, ((0, mp - m_rows), (0, kp - k)))

    in_specs = [pl.BlockSpec((tm, kp), lambda i: (i, 0)),
                pl.BlockSpec((kp, np_), lambda i: (0, 0)),
                pl.BlockSpec((1, np_), lambda i: (0, 0))]
    params = pltpu.CompilerParams(dimension_semantics=("parallel",))

    if not emit_stats:
        out = pl.pallas_call(
            functools.partial(_mm_kernel, post_act=post_act),
            out_shape=jax.ShapeDtypeStruct((mp, np_), out_dtype),
            grid=(n_tiles,),
            in_specs=in_specs,
            out_specs=pl.BlockSpec((tm, np_), lambda i: (i, 0)),
            compiler_params=params,
        )(a_p, b_packed, bias_row)
        return out, None

    out, s_t, q_t = pl.pallas_call(
        _mm_stats_kernel,
        out_shape=(jax.ShapeDtypeStruct((mp, np_), out_dtype),
                   jax.ShapeDtypeStruct((n_tiles * 8, np_), jnp.float32),
                   jax.ShapeDtypeStruct((n_tiles * 8, np_), jnp.float32)),
        grid=(n_tiles,),
        in_specs=in_specs,
        out_specs=(pl.BlockSpec((tm, np_), lambda i: (i, 0)),
                   pl.BlockSpec((8, np_), lambda i: (i, 0)),
                   pl.BlockSpec((8, np_), lambda i: (i, 0))),
        compiler_params=params,
    )(a_p, b_packed, bias_row)
    # Rows 1..7 of each per-tile stats block replicate row 0; reduce over tiles.
    col_sum = s_t.reshape(n_tiles, 8, np_)[:, 0, :].sum(axis=0)
    col_sq = q_t.reshape(n_tiles, 8, np_)[:, 0, :].sum(axis=0)
    return out, (col_sum, col_sq)


# --------------------------- conv glue (im2col) ----------------------------

def _extract_patches(x, k, stride, pad):
    """bf16 im2col; K layout = ((ky, kx), cin), matching the packed weights."""
    n, h, w, c = x.shape
    xp = jnp.pad(x, ((0, 0), (pad, pad), (pad, pad), (0, 0)))
    ho = (h + 2 * pad - k) // stride + 1
    wo = (w + 2 * pad - k) // stride + 1
    slabs = [xp[:, i:i + stride * ho:stride, j:j + stride * wo:stride, :]
             for i in range(k) for j in range(k)]
    p = jnp.stack(slabs, axis=3)                      # (N, Ho, Wo, k*k, C)
    return p.reshape(n, ho, wo, k * k * c), ho, wo


def conv_down(x, w_packed, cout, want_stats):
    """nn.Conv2d(k=4, s=2, p=1, bias=False) as one fused MXU GEMM.

    When want_stats, per-channel (sum, sumsq) of the raw conv output are
    produced in the GEMM epilogue so BatchNorm needs no extra HBM pass.
    """
    n, h, w, c = x.shape
    patches, ho, wo = _extract_patches(x, 4, 2, 1)
    m = n * ho * wo
    a = patches.reshape(m, 16 * c)
    np_ = w_packed.shape[1]
    out_p, stats = fused_matmul(a, w_packed, jnp.zeros((1, np_), jnp.float32),
                                emit_stats=want_stats)
    out = out_p[:m, :cout].reshape(n, ho, wo, cout)
    if want_stats:
        s, q = stats
        stats = (s[:cout], q[:cout], float(m))
    return out, stats


def convT_up(x, w_packed, cout, bias=None, post_act=None, want_stats=False):
    """nn.ConvTranspose2d(k=4, s=2, p=1) via 2x2 sub-pixel phase decomposition.

    Output pixel (2a+dy, 2b+dx) only sees a 2x2 input window (base (a+dy, b+dx)
    in pad-1 coordinates) through taps ky = 3-dy-2r, kx = 3-dx-2c, so the whole
    op is one GEMM with K = 4*Cin and 4*Cout phase-grouped output columns.
    """
    n, h, w, c = x.shape
    patches, hp, wp = _extract_patches(x, 2, 1, 1)    # (h+1, w+1) bases
    m = n * hp * wp
    a = patches.reshape(m, 4 * c)
    np_ = w_packed.shape[1]
    if bias is None:
        bias_row = jnp.zeros((1, np_), jnp.float32)
    else:
        bias_row = jnp.pad(jnp.tile(bias, 4), (0, np_ - 4 * cout)).reshape(1, np_)
    out_dtype = jnp.float32 if post_act == "tanh" else jnp.bfloat16
    out_p, _ = fused_matmul(a, w_packed, bias_row, post_act=post_act,
                            out_dtype=out_dtype)
    y = out_p[:m, :4 * cout].reshape(n, hp, wp, 2, 2, cout)
    ee = y[:, :h, :w, 0, 0, :]                        # -> out[2i,   2j  ]
    eo = y[:, :h, 1:, 0, 1, :]                        # -> out[2i,   2j+1]
    oe = y[:, 1:, :w, 1, 0, :]                        # -> out[2i+1, 2j  ]
    oo = y[:, 1:, 1:, 1, 1, :]                        # -> out[2i+1, 2j+1]
    ph = jnp.stack([ee, eo, oe, oo], axis=-2).reshape(n, h, w, 2, 2, cout)
    full = ph.transpose(0, 1, 3, 2, 4, 5).reshape(n, 2 * h, 2 * w, cout)
    if not want_stats:
        return full, None
    # Per-phase valid-base masking makes in-kernel stats awkward here, so the
    # up-path BN stats come from a single fused XLA reduce over the bf16 output.
    f = full.astype(jnp.float32)
    s = jnp.sum(f, axis=(0, 1, 2))
    q = jnp.sum(f * f, axis=(0, 1, 2))
    return full, (s, q, float(n * 4 * h * w))


# --------------------------- BatchNorm (deferred) ---------------------------

def _bn_scale_shift(stats, gamma, beta, eps=1e-5):
    """Train-mode (batch-stat) BatchNorm folded to a per-channel scale/shift."""
    s, q, count = stats
    mean = s / count
    var = jnp.maximum(q / count - mean * mean, 0.0)   # guard f32 cancellation
    scale = gamma * jax.lax.rsqrt(var + eps)
    return scale, beta - mean * scale


def _materialize(lazy, act=None):
    """Apply the deferred BN normalize (+ LeakyReLU/ReLU) of a conv output.

    These elementwise ops fuse into the consumer's pad + patch-gather XLA glue,
    so no standalone BatchNorm pass over HBM is needed.
    """
    raw, scale, shift = lazy
    y = raw.astype(jnp.float32)
    if scale is not None:
        y = y * scale + shift
    if act == "leaky_relu":                           # nn.LeakyReLU(0.2)
        y = jnp.where(y >= 0, y, 0.2 * y)
    elif act == "relu":                               # nn.ReLU
        y = jnp.maximum(y, 0.0)
    return y.astype(jnp.bfloat16)


# ------------------------ weight pre-packing (init) ------------------------

def pack_conv_w(w_oihw):
    """Conv2d weight (Cout, Cin, 4, 4) -> lane-padded bf16 (Kp, Np) matrix."""
    cout, cin, k, _ = w_oihw.shape
    kdim = k * k * cin
    w_mat = jnp.transpose(w_oihw, (2, 3, 1, 0)).reshape(kdim, cout)
    kp, np_ = _round_up(kdim, 128), _round_up(cout, 128)
    return jnp.pad(w_mat, ((0, kp - kdim), (0, np_ - cout))).astype(jnp.bfloat16)


def pack_convT_w(w_iohw):
    """ConvTranspose2d weight (Cin, Cout, 4, 4) -> bf16 phase-GEMM matrix."""
    cin, cout, _, _ = w_iohw.shape
    sub = w_iohw[:, :, ::-1, ::-1]                    # sub[..,m,n] = w[..,3-m,3-n]
    sub6 = sub.reshape(cin, cout, 2, 2, 2, 2)         # (ci, co, r, dy, c, dx)
    wb = jnp.transpose(sub6, (2, 4, 0, 3, 5, 1))      # (r, c, ci, dy, dx, co)
    kdim, ndim = 4 * cin, 4 * cout
    w_mat = wb.reshape(kdim, ndim)
    kp, np_ = _round_up(kdim, 128), _round_up(ndim, 128)
    return jnp.pad(w_mat, ((0, kp - kdim), (0, np_ - ndim))).astype(jnp.bfloat16)


# --------------------------- UNet parameters -------------------------------

def _normal(key, shape, std=0.02):
    return std * jax.random.normal(key, shape, jnp.float32)


def init_unet_block(key, out_f, in_f, submodule=None, input_channels=None,
                    dropout=False, innermost=False, outermost=False):
    if input_channels is None:
        input_channels = out_f
    k0, k1, k2 = jax.random.split(key, 3)
    p = {"cfg": {"innermost": innermost, "outermost": outermost,
                 "dropout": dropout, "down_cout": in_f, "up_cout": out_f}}
    p["downconv_w"] = pack_conv_w(_normal(k0, (in_f, input_channels, 4, 4)))
    if not (innermost or outermost):
        p["downnorm_gamma"] = jnp.ones((in_f,), jnp.float32)
        p["downnorm_beta"] = jnp.zeros((in_f,), jnp.float32)
    up_in = in_f if innermost else in_f * 2
    p["upconv_w"] = pack_convT_w(_normal(k1, (up_in, out_f, 4, 4)))
    if outermost:
        p["upconv_b"] = _normal(k2, (out_f,))         # only outermost has bias
    else:
        p["upnorm_gamma"] = jnp.ones((out_f,), jnp.float32)
        p["upnorm_beta"] = jnp.zeros((out_f,), jnp.float32)
    p["sub"] = submodule
    return p


def init_unet(key, input_channels=1, output_channels=2,
              num_downsampling=5, num_init_filters=8):
    nf = num_init_filters
    keys = iter(jax.random.split(key, num_downsampling))
    block = init_unet_block(next(keys), nf * 8, nf * 8, innermost=True)
    for _ in range(num_downsampling - 5):
        block = init_unet_block(next(keys), nf * 8, nf * 8,
                                submodule=block, dropout=True)
    out_f = nf * 8
    for _ in range(3):
        block = init_unet_block(next(keys), out_f // 2, out_f, submodule=block)
        out_f //= 2
    return init_unet_block(next(keys), output_channels, out_f, submodule=block,
                           input_channels=input_channels, outermost=True)


# ------------------------------ UNet forward -------------------------------

def unet_block_forward(p, x_lazy):
    cfg = p["cfg"]
    # ---- down: (leaky_relu) -> conv -> (BN stats from the GEMM epilogue) ----
    down_act = None if cfg["outermost"] else "leaky_relu"
    a_down = _materialize(x_lazy, down_act)
    down_bn = not (cfg["outermost"] or cfg["innermost"])
    raw_down, st = conv_down(a_down, p["downconv_w"], cfg["down_cout"], down_bn)
    if down_bn:
        sc, sh = _bn_scale_shift(st, p["downnorm_gamma"], p["downnorm_beta"])
        h_lazy = (raw_down, sc, sh)
    else:
        h_lazy = (raw_down, None, None)
    # ---- submodule ----
    if p["sub"] is not None:
        pieces = unet_block_forward(p["sub"], h_lazy)
        up_in = jnp.concatenate([_materialize(t, "relu") for t in pieces],
                                axis=-1)              # uprelu(cat([x, sub]))
    else:                                             # innermost
        up_in = _materialize(h_lazy, "relu")
    # ---- up: relu -> convT -> (BN | bias+tanh) ----
    if cfg["outermost"]:
        out, _ = convT_up(up_in, p["upconv_w"], cfg["up_cout"],
                          bias=p["upconv_b"], post_act="tanh")
        return out                                    # (N, H, W, Cout) f32
    raw_up, st_up = convT_up(up_in, p["upconv_w"], cfg["up_cout"],
                             want_stats=True)
    sc_u, sh_u = _bn_scale_shift(st_up, p["upnorm_gamma"], p["upnorm_beta"])
    # TODO(synk): train-mode nn.Dropout(0.5) is stochastic; applied as identity.
    # NOTE: torch's inplace LeakyReLU would mutate x before torch.cat reads it;
    # we keep the functional (un-mutated) skip connection as the module is written.
    return [x_lazy, (raw_up, sc_u, sh_u)]             # torch.cat([x, model(x)])


def unet_forward(params, x_nchw):
    x = jnp.transpose(x_nchw, (0, 2, 3, 1)).astype(jnp.bfloat16)   # NCHW -> NHWC
    y = unet_block_forward(params, (x, None, None))
    return jnp.transpose(y, (0, 3, 1, 2))             # NHWC -> NCHW (f32)


# --------------------------------- main -------------------------------------

if __name__ == "__main__":
    key = jax.random.PRNGKey(0)
    pkey, xkey = jax.random.split(key)

    # Smallest configuration the constructor supports (num_downsampling=5,
    # num_init_filters=8): a 32x32 input reaches 1x1 at the innermost block.
    params = init_unet(pkey, input_channels=1, output_channels=2,
                       num_downsampling=5, num_init_filters=8)

    x = jax.random.normal(xkey, (2, 1, 32, 32), jnp.float32)       # NCHW
    fwd = jax.jit(functools.partial(unet_forward, params))
    y = fwd(x)
    jax.block_until_ready(y)

    assert y.shape == (2, 2, 32, 32), y.shape
    assert bool(jnp.all(jnp.isfinite(y)))
    print("KERNEL_OK")
</pallas_src>

<mosaic_0001>
module attributes {stable_mosaic.version = 11 : i64} {
  func.func @_mm_kernel(%arg0: i32, %arg1: memref<512x128xbf16, #tpu.memory_space<vmem>>, %arg2: memref<128x128xbf16, #tpu.memory_space<vmem>>, %arg3: memref<1x128xf32, #tpu.memory_space<vmem>>, %arg4: memref<512x128xbf16, #tpu.memory_space<vmem>>) attributes {dimension_semantics = [#tpu.dimension_semantics<parallel>], iteration_bounds = array<i64: 1>, scalar_prefetch = 0 : i64, scratch_operands = 0 : i64, tpu.core_type = #tpu.core_type<tc>, window_params = [{transform_indices = @transform_0, window_bounds = array<i64: 512, 128>}, {pipeline_mode = #tpu.pipeline_mode<synchronous>, transform_indices = @transform_1, window_bounds = array<i64: 128, 128>}, {pipeline_mode = #tpu.pipeline_mode<synchronous>, transform_indices = @transform_2, window_bounds = array<i64: 1, 128>}, {transform_indices = @transform_3, window_bounds = array<i64: 512, 128>}]} {
    %c0 = arith.constant 0 : index
    %c0_0 = arith.constant 0 : index
    %0 = vector.load %arg1[%c0, %c0_0] : memref<512x128xbf16, #tpu.memory_space<vmem>>, vector<512x128xbf16>
    %c0_1 = arith.constant 0 : index
    %c0_2 = arith.constant 0 : index
    %1 = vector.load %arg2[%c0_1, %c0_2] : memref<128x128xbf16, #tpu.memory_space<vmem>>, vector<128x128xbf16>
    %cst = arith.constant dense<0.000000e+00> : vector<512x128xf32>
    %2 = tpu.matmul %0, %1, %cst {dimension_numbers = #tpu.dot_dimension_numbers<[1], [0], [0], [1], [0, 0, 1, 1], [], []>} : vector<512x128xbf16>, vector<128x128xbf16>, vector<512x128xf32> -> vector<512x128xf32>
    %c0_3 = arith.constant 0 : index
    %c0_4 = arith.constant 0 : index
    %3 = vector.load %arg3[%c0_3, %c0_4] : memref<1x128xf32, #tpu.memory_space<vmem>>, vector<1x128xf32>
    %4 = vector.broadcast %3 : vector<1x128xf32> to vector<512x128xf32>
    %5 = arith.addf %2, %4 : vector<512x128xf32>
    %6 = arith.truncf %5 : vector<512x128xf32> to vector<512x128xbf16>
    %c0_5 = arith.constant 0 : index
    %c0_6 = arith.constant 0 : index
    %7 = vector.load %arg4[%c0_5, %c0_6] : memref<512x128xbf16, #tpu.memory_space<vmem>>, vector<512x128xbf16>
    tpu.vector_store %arg4[%c0_5, %c0_6], %6 {strides = array<i32>} : memref<512x128xbf16, #tpu.memory_space<vmem>>, vector<512x128xbf16>,
    return
  }
  func.func @transform_0(%arg0: i32) -> (i32, i32) {
    %c0_i32 = arith.constant 0 : i32
    %c0_i32_0 = arith.constant 0 : i32
    return %arg0, %c0_i32 : i32, i32
  }
  func.func @transform_1(%arg0: i32) -> (i32, i32) {
    %c0_i32 = arith.constant 0 : i32
    %c0_i32_0 = arith.constant 0 : i32
    %c0_i32_1 = arith.constant 0 : i32
    return %c0_i32, %c0_i32_0 : i32, i32
  }
  func.func @transform_2(%arg0: i32) -> (i32, i32) {
    %c0_i32 = arith.constant 0 : i32
    %c0_i32_0 = arith.constant 0 : i32
    %c0_i32_1 = arith.constant 0 : i32
    return %c0_i32, %c0_i32_0 : i32, i32
  }
  func.func @transform_3(%arg0: i32) -> (i32, i32) {
    %c0_i32 = arith.constant 0 : i32
    %c0_i32_0 = arith.constant 0 : i32
    return %arg0, %c0_i32 : i32, i32
  }
}

module attributes {stable_mosaic.version = 11 : i64} {
  func.func @_mm_stats_kernel(%arg0: i32, %arg1: memref<128x128xbf16, #tpu.memory_space<vmem>>, %arg2: memref<128x128xbf16, #tpu.memory_space<vmem>>, %arg3: memref<1x128xf32, #tpu.memory_space<vmem>>, %arg4: memref<128x128xbf16, #tpu.memory_space<vmem>>, %arg5: memref<8x128xf32, #tpu.memory_space<vmem>>, %arg6: memref<8x128xf32, #tpu.memory_space<vmem>>) attributes {dimension_semantics = [#tpu.dimension_semantics<parallel>], iteration_bounds = array<i64: 1>, scalar_prefetch = 0 : i64, scratch_operands = 0 : i64, tpu.core_type = #tpu.core_type<tc>, window_params = [{transform_indices = @transform_0, window_bounds = array<i64: 128, 128>}, {pipeline_mode = #tpu.pipeline_mode<synchronous>, transform_indices = @transform_1, window_bounds = array<i64: 128, 128>}, {pipeline_mode = #tpu.pipeline_mode<synchronous>, transform_indices = @transform_2, window_bounds = array<i64: 1, 128>}, {transform_indices = @transform_3, window_bounds = array<i64: 128, 128>}, {transform_indices = @transform_4, window_bounds = array<i64: 8, 128>}, {transform_indices = @transform_5, window_bounds = array<i64: 8, 128>}]} {
    %c0 = arith.constant 0 : index
    %c0_0 = arith.constant 0 : index
    %0 = vector.load %arg1[%c0, %c0_0] : memref<128x128xbf16, #tpu.memory_space<vmem>>, vector<128x128xbf16>
    %c0_1 = arith.constant 0 : index
    %c0_2 = arith.constant 0 : index
    %1 = vector.load %arg2[%c0_1, %c0_2] : memref<128x128xbf16, #tpu.memory_space<vmem>>, vector<128x128xbf16>
    %cst = arith.constant dense<0.000000e+00> : vector<128x128xf32>
    %2 = tpu.matmul %0, %1, %cst {dimension_numbers = #tpu.dot_dimension_numbers<[1], [0], [0], [1], [0, 0, 1, 1], [], []>} : vector<128x128xbf16>, vector<128x128xbf16>, vector<128x128xf32> -> vector<128x128xf32>
    %c0_3 = arith.constant 0 : index
    %c0_4 = arith.constant 0 : index
    %3 = vector.load %arg3[%c0_3, %c0_4] : memref<1x128xf32, #tpu.memory_space<vmem>>, vector<1x128xf32>
    %4 = vector.broadcast %3 : vector<1x128xf32> to vector<128x128xf32>
    %5 = arith.addf %2, %4 : vector<128x128xf32>
    %6 = arith.truncf %5 : vector<128x128xf32> to vector<128x128xbf16>
    %c0_5 = arith.constant 0 : index
    %c0_6 = arith.constant 0 : index
    %7 = vector.load %arg4[%c0_5, %c0_6] : memref<128x128xbf16, #tpu.memory_space<vmem>>, vector<128x128xbf16>
    tpu.vector_store %arg4[%c0_5, %c0_6], %6 {strides = array<i32>} : memref<128x128xbf16, #tpu.memory_space<vmem>>, vector<128x128xbf16>,
    %cst_7 = arith.constant dense<0.000000e+00> : vector<128xf32>
    %8 = vector.multi_reduction <add>, %5, %cst_7 [0] : vector<128x128xf32> to vector<128xf32>
    %9 = vector.shape_cast %8 : vector<128xf32> to vector<1x128xf32>
    %10 = arith.mulf %5, %5 : vector<128x128xf32>
    %cst_8 = arith.constant dense<0.000000e+00> : vector<128xf32>
    %11 = vector.multi_reduction <add>, %10, %cst_8 [0] : vector<128x128xf32> to vector<128xf32>
    %12 = vector.shape_cast %11 : vector<128xf32> to vector<1x128xf32>
    %13 = vector.shape_cast %9 : vector<1x128xf32> to vector<1x128xf32>
    %14 = vector.broadcast %13 : vector<1x128xf32> to vector<8x128xf32>
    %c0_9 = arith.constant 0 : index
    %c0_10 = arith.constant 0 : index
    %15 = vector.load %arg5[%c0_9, %c0_10] : memref<8x128xf32, #tpu.memory_space<vmem>>, vector<8x128xf32>
    tpu.vector_store %arg5[%c0_9, %c0_10], %14 {strides = array<i32>} : memref<8x128xf32, #tpu.memory_space<vmem>>, vector<8x128xf32>,
    %16 = vector.shape_cast %12 : vector<1x128xf32> to vector<1x128xf32>
    %17 = vector.broadcast %16 : vector<1x128xf32> to vector<8x128xf32>
    %c0_11 = arith.constant 0 : index
    %c0_12 = arith.constant 0 : index
    %18 = vector.load %arg6[%c0_11, %c0_12] : memref<8x128xf32, #tpu.memory_space<vmem>>, vector<8x128xf32>
    tpu.vector_store %arg6[%c0_11, %c0_12], %17 {strides = array<i32>} : memref<8x128xf32, #tpu.memory_space<vmem>>, vector<8x128xf32>,
    return
  }
  func.func @transform_0(%arg0: i32) -> (i32, i32) {
    %c0_i32 = arith.constant 0 : i32
    %c0_i32_0 = arith.constant 0 : i32
    return %arg0, %c0_i32 : i32, i32
  }
  func.func @transform_1(%arg0: i32) -> (i32, i32) {
    %c0_i32 = arith.constant 0 : i32
    %c0_i32_0 = arith.constant 0 : i32
    %c0_i32_1 = arith.constant 0 : i32
    return %c0_i32, %c0_i32_0 : i32, i32
  }
  func.func @transform_2(%arg0: i32) -> (i32, i32) {
    %c0_i32 = arith.constant 0 : i32
    %c0_i32_0 = arith.constant 0 : i32
    %c0_i32_1 = arith.constant 0 : i32
    return %c0_i32, %c0_i32_0 : i32, i32
  }
  func.func @transform_3(%arg0: i32) -> (i32, i32) {
    %c0_i32 = arith.constant 0 : i32
    %c0_i32_0 = arith.constant 0 : i32
    return %arg0, %c0_i32 : i32, i32
  }
  func.func @transform_4(%arg0: i32) -> (i32, i32) {
    %c0_i32 = arith.constant 0 : i32
    %c0_i32_0 = arith.constant 0 : i32
    return %arg0, %c0_i32 : i32, i32
  }
  func.func @transform_5(%arg0: i32) -> (i32, i32) {
    %c0_i32 = arith.constant 0 : i32
    %c0_i32_0 = arith.constant 0 : i32
    return %arg0, %c0_i32 : i32, i32
  }
}

module attributes {stable_mosaic.version = 11 : i64} {
  func.func @_mm_kernel(%arg0: i32, %arg1: memref<56x256xbf16, #tpu.memory_space<vmem>>, %arg2: memref<256x128xbf16, #tpu.memory_space<vmem>>, %arg3: memref<1x128xf32, #tpu.memory_space<vmem>>, %arg4: memref<56x128xbf16, #tpu.memory_space<vmem>>) attributes {dimension_semantics = [#tpu.dimension_semantics<parallel>], iteration_bounds = array<i64: 1>, scalar_prefetch = 0 : i64, scratch_operands = 0 : i64, tpu.core_type = #tpu.core_type<tc>, window_params = [{transform_indices = @transform_0, window_bounds = array<i64: 56, 256>}, {pipeline_mode = #tpu.pipeline_mode<synchronous>, transform_indices = @transform_1, window_bounds = array<i64: 256, 128>}, {pipeline_mode = #tpu.pipeline_mode<synchronous>, transform_indices = @transform_2, window_bounds = array<i64: 1, 128>}, {transform_indices = @transform_3, window_bounds = array<i64: 56, 128>}]} {
    %c0 = arith.constant 0 : index
    %c0_0 = arith.constant 0 : index
    %0 = vector.load %arg1[%c0, %c0_0] : memref<56x256xbf16, #tpu.memory_space<vmem>>, vector<56x256xbf16>
    %c0_1 = arith.constant 0 : index
    %c0_2 = arith.constant 0 : index
    %1 = vector.load %arg2[%c0_1, %c0_2] : memref<256x128xbf16, #tpu.memory_space<vmem>>, vector<256x128xbf16>
    %cst = arith.constant dense<0.000000e+00> : vector<56x128xf32>
    %2 = tpu.matmul %0, %1, %cst {dimension_numbers = #tpu.dot_dimension_numbers<[1], [0], [0], [1], [0, 0, 1, 1], [], []>} : vector<56x256xbf16>, vector<256x128xbf16>, vector<56x128xf32> -> vector<56x128xf32>
    %c0_3 = arith.constant 0 : index
    %c0_4 = arith.constant 0 : index
    %3 = vector.load %arg3[%c0_3, %c0_4] : memref<1x128xf32, #tpu.memory_space<vmem>>, vector<1x128xf32>
    %4 = vector.broadcast %3 : vector<1x128xf32> to vector<56x128xf32>
    %5 = arith.addf %2, %4 : vector<56x128xf32>
    %6 = arith.truncf %5 : vector<56x128xf32> to vector<56x128xbf16>
    %c0_5 = arith.constant 0 : index
    %c0_6 = arith.constant 0 : index
    %7 = vector.load %arg4[%c0_5, %c0_6] : memref<56x128xbf16, #tpu.memory_space<vmem>>, vector<56x128xbf16>
    tpu.vector_store %arg4[%c0_5, %c0_6], %6 {strides = array<i32>} : memref<56x128xbf16, #tpu.memory_space<vmem>>, vector<56x128xbf16>,
    return
  }
  func.func @transform_0(%arg0: i32) -> (i32, i32) {
    %c0_i32 = arith.constant 0 : i32
    %c0_i32_0 = arith.constant 0 : i32
    return %arg0, %c0_i32 : i32, i32
  }
  func.func @transform_1(%arg0: i32) -> (i32, i32) {
    %c0_i32 = arith.constant 0 : i32
    %c0_i32_0 = arith.constant 0 : i32
    %c0_i32_1 = arith.constant 0 : i32
    return %c0_i32, %c0_i32_0 : i32, i32
  }
  func.func @transform_2(%arg0: i32) -> (i32, i32) {
    %c0_i32 = arith.constant 0 : i32
    %c0_i32_0 = arith.constant 0 : i32
    %c0_i32_1 = arith.constant 0 : i32
    return %c0_i32, %c0_i32_0 : i32, i32
  }
  func.func @transform_3(%arg0: i32) -> (i32, i32) {
    %c0_i32 = arith.constant 0 : i32
    %c0_i32_0 = arith.constant 0 : i32
    return %arg0, %c0_i32 : i32, i32
  }
}

module attributes {stable_mosaic.version = 11 : i64} {
  func.func @_mm_kernel(%arg0: i32, %arg1: memref<168x128xbf16, #tpu.memory_space<vmem>>, %arg2: memref<128x128xbf16, #tpu.memory_space<vmem>>, %arg3: memref<1x128xf32, #tpu.memory_space<vmem>>, %arg4: memref<168x128xbf16, #tpu.memory_space<vmem>>) attributes {dimension_semantics = [#tpu.dimension_semantics<parallel>], iteration_bounds = array<i64: 1>, scalar_prefetch = 0 : i64, scratch_operands = 0 : i64, tpu.core_type = #tpu.core_type<tc>, window_params = [{transform_indices = @transform_0, window_bounds = array<i64: 168, 128>}, {pipeline_mode = #tpu.pipeline_mode<synchronous>, transform_indices = @transform_1, window_bounds = array<i64: 128, 128>}, {pipeline_mode = #tpu.pipeline_mode<synchronous>, transform_indices = @transform_2, window_bounds = array<i64: 1, 128>}, {transform_indices = @transform_3, window_bounds = array<i64: 168, 128>}]} {
    %c0 = arith.constant 0 : index
    %c0_0 = arith.constant 0 : index
    %0 = vector.load %arg1[%c0, %c0_0] : memref<168x128xbf16, #tpu.memory_space<vmem>>, vector<168x128xbf16>
    %c0_1 = arith.constant 0 : index
    %c0_2 = arith.constant 0 : index
    %1 = vector.load %arg2[%c0_1, %c0_2] : memref<128x128xbf16, #tpu.memory_space<vmem>>, vector<128x128xbf16>
    %cst = arith.constant dense<0.000000e+00> : vector<168x128xf32>
    %2 = tpu.matmul %0, %1, %cst {dimension_numbers = #tpu.dot_dimension_numbers<[1], [0], [0], [1], [0, 0, 1, 1], [], []>} : vector<168x128xbf16>, vector<128x128xbf16>, vector<168x128xf32> -> vector<168x128xf32>
    %c0_3 = arith.constant 0 : index
    %c0_4 = arith.constant 0 : index
    %3 = vector.load %arg3[%c0_3, %c0_4] : memref<1x128xf32, #tpu.memory_space<vmem>>, vector<1x128xf32>
    %4 = vector.broadcast %3 : vector<1x128xf32> to vector<168x128xf32>
    %5 = arith.addf %2, %4 : vector<168x128xf32>
    %6 = arith.truncf %5 : vector<168x128xf32> to vector<168x128xbf16>
    %c0_5 = arith.constant 0 : index
    %c0_6 = arith.constant 0 : index
    %7 = vector.load %arg4[%c0_5, %c0_6] : memref<168x128xbf16, #tpu.memory_space<vmem>>, vector<168x128xbf16>
    tpu.vector_store %arg4[%c0_5, %c0_6], %6 {strides = array<i32>} : memref<168x128xbf16, #tpu.memory_space<vmem>>, vector<168x128xbf16>,
    return
  }
  func.func @transform_0(%arg0: i32) -> (i32, i32) {
    %c0_i32 = arith.constant 0 : i32
    %c0_i32_0 = arith.constant 0 : i32
    return %arg0, %c0_i32 : i32, i32
  }
  func.func @transform_1(%arg0: i32) -> (i32, i32) {
    %c0_i32 = arith.constant 0 : i32
    %c0_i32_0 = arith.constant 0 : i32
    %c0_i32_1 = arith.constant 0 : i32
    return %c0_i32, %c0_i32_0 : i32, i32
  }
  func.func @transform_2(%arg0: i32) -> (i32, i32) {
    %c0_i32 = arith.constant 0 : i32
    %c0_i32_0 = arith.constant 0 : i32
    %c0_i32_1 = arith.constant 0 : i32
    return %c0_i32, %c0_i32_0 : i32, i32
  }
  func.func @transform_3(%arg0: i32) -> (i32, i32) {
    %c0_i32 = arith.constant 0 : i32
    %c0_i32_0 = arith.constant 0 : i32
    return %arg0, %c0_i32 : i32, i32
  }
}

module attributes {stable_mosaic.version = 11 : i64} {
  func.func @_mm_kernel(%arg0: i32, %arg1: memref<512x128xbf16, #tpu.memory_space<vmem>>, %arg2: memref<128x128xbf16, #tpu.memory_space<vmem>>, %arg3: memref<1x128xf32, #tpu.memory_space<vmem>>, %arg4: memref<512x128xf32, #tpu.memory_space<vmem>>) attributes {dimension_semantics = [#tpu.dimension_semantics<parallel>], iteration_bounds = array<i64: 2>, scalar_prefetch = 0 : i64, scratch_operands = 0 : i64, tpu.core_type = #tpu.core_type<tc>, window_params = [{transform_indices = @transform_0, window_bounds = array<i64: 512, 128>}, {pipeline_mode = #tpu.pipeline_mode<synchronous>, transform_indices = @transform_1, window_bounds = array<i64: 128, 128>}, {pipeline_mode = #tpu.pipeline_mode<synchronous>, transform_indices = @transform_2, window_bounds = array<i64: 1, 128>}, {transform_indices = @transform_3, window_bounds = array<i64: 512, 128>}]} {
    %c0 = arith.constant 0 : index
    %c0_0 = arith.constant 0 : index
    %0 = vector.load %arg1[%c0, %c0_0] : memref<512x128xbf16, #tpu.memory_space<vmem>>, vector<512x128xbf16>
    %c0_1 = arith.constant 0 : index
    %c0_2 = arith.constant 0 : index
    %1 = vector.load %arg2[%c0_1, %c0_2] : memref<128x128xbf16, #tpu.memory_space<vmem>>, vector<128x128xbf16>
    %cst = arith.constant dense<0.000000e+00> : vector<512x128xf32>
    %2 = tpu.matmul %0, %1, %cst {dimension_numbers = #tpu.dot_dimension_numbers<[1], [0], [0], [1], [0, 0, 1, 1], [], []>} : vector<512x128xbf16>, vector<128x128xbf16>, vector<512x128xf32> -> vector<512x128xf32>
    %c0_3 = arith.constant 0 : index
    %c0_4 = arith.constant 0 : index
    %3 = vector.load %arg3[%c0_3, %c0_4] : memref<1x128xf32, #tpu.memory_space<vmem>>, vector<1x128xf32>
    %4 = vector.broadcast %3 : vector<1x128xf32> to vector<512x128xf32>
    %5 = arith.addf %2, %4 : vector<512x128xf32>
    %6 = math.tanh %5 : vector<512x128xf32>
    %c0_5 = arith.constant 0 : index
    %c0_6 = arith.constant 0 : index
    %7 = vector.load %arg4[%c0_5, %c0_6] : memref<512x128xf32, #tpu.memory_space<vmem>>, vector<512x128xf32>
    tpu.vector_store %arg4[%c0_5, %c0_6], %6 {strides = array<i32>} : memref<512x128xf32, #tpu.memory_space<vmem>>, vector<512x128xf32>,
    return
  }
  func.func @transform_0(%arg0: i32) -> (i32, i32) {
    %c0_i32 = arith.constant 0 : i32
    %c0_i32_0 = arith.constant 0 : i32
    return %arg0, %c0_i32 : i32, i32
  }
  func.func @transform_1(%arg0: i32) -> (i32, i32) {
    %c0_i32 = arith.constant 0 : i32
    %c0_i32_0 = arith.constant 0 : i32
    %c0_i32_1 = arith.constant 0 : i32
    return %c0_i32, %c0_i32_0 : i32, i32
  }
  func.func @transform_2(%arg0: i32) -> (i32, i32) {
    %c0_i32 = arith.constant 0 : i32
    %c0_i32_0 = arith.constant 0 : i32
    %c0_i32_1 = arith.constant 0 : i32
    return %c0_i32, %c0_i32_0 : i32, i32
  }
  func.func @transform_3(%arg0: i32) -> (i32, i32) {
    %c0_i32 = arith.constant 0 : i32
    %c0_i32_0 = arith.constant 0 : i32
    return %arg0, %c0_i32 : i32, i32
  }
}

</mosaic_0001>

<llo_original>
// kernel: unet_forward.5
$region0: #{unet_forward.5}
  #allocation0 [shape = 'u32[]', space=smem, size = 0x4, offset = 0x4, fixed_abs, tag = 'smem constant byte address 0x4 - core index']
  #allocation1 [shape = 'u32[72,128]{1,0:T(1,128)}', space=vmem, size = 0x9000, scoped, tag = 'internal scratch']
  %s0 = inlined_call_operand.vmem [shape: bf16[512,128], index: 0, kind: input, shape index: {}]
  %s1 = inlined_call_operand.vmem [shape: bf16[128,128], index: 1, kind: input, shape index: {}]
  %s2 = inlined_call_operand.vmem [shape: f32[1,128], index: 2, kind: input, shape index: {}]
  %s3 = inlined_call_operand.vmem [shape: bf16[512,128], index: 3, kind: output, shape index: {}]
  %s4 = sld [smem:[#allocation0]]
  $region22: #{unet_forward.5} parent=0
    _
  %s6 = ssub.s32 1, %s4
  %s7 = scalar_select 0, %s6, %s4
  // Predicated region
  $region2: #{unet_forward.5} parent=0 // pred_check
    _
  $region3: #{unet_forward.5} parent=0 // pred_check_branch
    %9 = sbr.rel (0) target = $region5
  $region4: #{unet_forward.5} parent=0 // pred_region
    _
  $region5: #{unet_forward.5} parent=0 // pred_fallthru
    _
  // Predicated region
  $region6: #{unet_forward.5} parent=0 // pred_check
    _
  $region7: #{unet_forward.5} parent=0 // pred_check_branch
    %11 = sbr.rel (0) target = $region9
  $region8: #{unet_forward.5} parent=0 // pred_region
    _
  $region9: #{unet_forward.5} parent=0 // pred_fallthru
    _
  // Predicated region
  $region10: #{unet_forward.5} parent=0 // pred_check
    _
  $region11: #{unet_forward.5} parent=0 // pred_check_branch
    %13 = sbr.rel (0) target = $region13
  $region12: #{unet_forward.5} parent=0 // pred_region
    _
  $region13: #{unet_forward.5} parent=0 // pred_fallthru
    _
  %v14 = vld [vmem:[%s0] sm:$0xf]
  %v15 = vld [vmem:[%s0 + $0x4] sm:$0xf]
  %v16 = vld [vmem:[%s0 + $0x8] sm:$0xf]
  %v17 = vld [vmem:[%s0 + $0xc] sm:$0xf]
  %v18 = vld [vmem:[%s0 + $0x10] sm:$0xf]
  %v19 = vld [vmem:[%s0 + $0x14] sm:$0xf]
  %v20 = vld [vmem:[%s0 + $0x18] sm:$0xf]
  %v21 = vld [vmem:[%s0 + $0x1c] sm:$0xf]
  %v22 = vld [vmem:[%s0 + $0x20] sm:$0xf]
  %v23 = vld [vmem:[%s0 + $0x24] sm:$0xf]
  %v24 = vld [vmem:[%s0 + $0x28] sm:$0xf]
  %v25 = vld [vmem:[%s0 + $0x2c] sm:$0xf]
  %v26 = vld [vmem:[%s0 + $0x30] sm:$0xf]
  %v27 = vld [vmem:[%s0 + $0x34] sm:$0xf]
  %v28 = vld [vmem:[%s0 + $0x38] sm:$0xf]
  %v29 = vld [vmem:[%s0 + $0x3c] sm:$0xf]
  %v30 = vld [vmem:[%s0 + $0x40] sm:$0xf]
  %v31 = vld [vmem:[%s0 + $0x44] sm:$0xf]
  %v32 = vld [vmem:[%s0 + $0x48] sm:$0xf]
  %v33 = vld [vmem:[%s0 + $0x4c] sm:$0xf]
  %v34 = vld [vmem:[%s0 + $0x50] sm:$0xf]
  %v35 = vld [vmem:[%s0 + $0x54] sm:$0xf]
  %v36 = vld [vmem:[%s0 + $0x58] sm:$0xf]
  %v37 = vld [vmem:[%s0 + $0x5c] sm:$0xf]
  %v38 = vld [vmem:[%s0 + $0x60] sm:$0xf]
  %v39 = vld [vmem:[%s0 + $0x64] sm:$0xf]
  %v40 = vld [vmem:[%s0 + $0x68] sm:$0xf]
  %v41 = vld [vmem:[%s0 + $0x6c] sm:$0xf]
  %v42 = vld [vmem:[%s0 + $0x70] sm:$0xf]
  %v43 = vld [vmem:[%s0 + $0x74] sm:$0xf]
  %v44 = vld [vmem:[%s0 + $0x78] sm:$0xf]
  %v45 = vld [vmem:[%s0 + $0x7c] sm:$0xf]
  %v46 = vld [vmem:[%s0 + $0x80] sm:$0xf]
  %v47 = vld [vmem:[%s0 + $0x84] sm:$0xf]
  %v48 = vld [vmem:[%s0 + $0x88] sm:$0xf]
  %v49 = vld [vmem:[%s0 + $0x8c] sm:$0xf]
  %v50 = vld [vmem:[%s0 + $0x90] sm:$0xf]
  %v51 = vld [vmem:[%s0 + $0x94] sm:$0xf]
  %v52 = vld [vmem:[%s0 + $0x98] sm:$0xf]
  %v53 = vld [vmem:[%s0 + $0x9c] sm:$0xf]
  %v54 = vld [vmem:[%s0 + $0xa0] sm:$0xf]
  %v55 = vld [vmem:[%s0 + $0xa4] sm:$0xf]
  %v56 = vld [vmem:[%s0 + $0xa8] sm:$0xf]
  %v57 = vld [vmem:[%s0 + $0xac] sm:$0xf]
  %v58 = vld [vmem:[%s0 + $0xb0] sm:$0xf]
  %v59 = vld [vmem:[%s0 + $0xb4] sm:$0xf]
  %v60 = vld [vmem:[%s0 + $0xb8] sm:$0xf]
  %v61 = vld [vmem:[%s0 + $0xbc] sm:$0xf]
  %v62 = vld [vmem:[%s0 + $0xc0] sm:$0xf]
  %v63 = vld [vmem:[%s0 + $0xc4] sm:$0xf]
  %v64 = vld [vmem:[%s0 + $0xc8] sm:$0xf]
  %v65 = vld [vmem:[%s0 + $0xcc] sm:$0xf]
  %v66 = vld [vmem:[%s0 + $0xd0] sm:$0xf]
  %v67 = vld [vmem:[%s0 + $0xd4] sm:$0xf]
  %v68 = vld [vmem:[%s0 + $0xd8] sm:$0xf]
  %v69 = vld [vmem:[%s0 + $0xdc] sm:$0xf]
  %v70 = vld [vmem:[%s0 + $0xe0] sm:$0xf]
  %v71 = vld [vmem:[%s0 + $0xe4] sm:$0xf]
  %v72 = vld [vmem:[%s0 + $0xe8] sm:$0xf]
  %v73 = vld [vmem:[%s0 + $0xec] sm:$0xf]
  %v74 = vld [vmem:[%s0 + $0xf0] sm:$0xf]
  %v75 = vld [vmem:[%s0 + $0xf4] sm:$0xf]
  %v76 = vld [vmem:[%s0 + $0xf8] sm:$0xf]
  %v77 = vld [vmem:[%s0 + $0xfc] sm:$0xf]
  %v78 = vld [vmem:[%s1] sm:$0xf]
  %v79 = vld [vmem:[%s1 + $0x4] sm:$0xf]
  %v80 = vld [vmem:[%s1 + $0x8] sm:$0xf]
  %v81 = vld [vmem:[%s1 + $0xc] sm:$0xf]
  %v82 = vld [vmem:[%s1 + $0x10] sm:$0xf]
  %v83 = vld [vmem:[%s1 + $0x14] sm:$0xf]
  %v84 = vld [vmem:[%s1 + $0x18] sm:$0xf]
  %v85 = vld [vmem:[%s1 + $0x1c] sm:$0xf]
  %v86 = vld [vmem:[%s1 + $0x20] sm:$0xf]
  %v87 = vld [vmem:[%s1 + $0x24] sm:$0xf]
  %v88 = vld [vmem:[%s1 + $0x28] sm:$0xf]
  %v89 = vld [vmem:[%s1 + $0x2c] sm:$0xf]
  %v90 = vld [vmem:[%s1 + $0x30] sm:$0xf]
  %v91 = vld [vmem:[%s1 + $0x34] sm:$0xf]
  %v92 = vld [vmem:[%s1 + $0x38] sm:$0xf]
  %v93 = vld [vmem:[%s1 + $0x3c] sm:$0xf]
  %v94 = vld [vmem:[%s2] sm:$0x1]
  %v96 = vperm.slane %v94, 0
  %v162 = vunpack.c.l.b16 %v14
  %v163 = vunpack.c.l.b16 %v15
  %v164 = vunpack.c.l.b16 %v16
  %v165 = vunpack.c.l.b16 %v17
  %v166 = vunpack.c.l.b16 %v18
  %v167 = vunpack.c.l.b16 %v19
  %v168 = vunpack.c.l.b16 %v20
  %v169 = vunpack.c.l.b16 %v21
  %v170 = vunpack.c.l.b16 %v22
  %v171 = vunpack.c.l.b16 %v23
  %v172 = vunpack.c.l.b16 %v24
  %v173 = vunpack.c.l.b16 %v25
  %v174 = vunpack.c.l.b16 %v26
  %v175 = vunpack.c.l.b16 %v27
  %v176 = vunpack.c.l.b16 %v28
  %v177 = vunpack.c.l.b16 %v29
  %v178 = vunpack.c.l.b16 %v30
  %v179 = vunpack.c.l.b16 %v31
  %v180 = vunpack.c.l.b16 %v32
  %v181 = vunpack.c.l.b16 %v33
  %v182 = vunpack.c.l.b16 %v34
  %v183 = vunpack.c.l.b16 %v35
  %v184 = vunpack.c.l.b16 %v36
  %v185 = vunpack.c.l.b16 %v37
  %v186 = vunpack.c.l.b16 %v38
  %v187 = vunpack.c.l.b16 %v39
  %v188 = vunpack.c.l.b16 %v40
  %v189 = vunpack.c.l.b16 %v41
  %v190 = vunpack.c.l.b16 %v42
  %v191 = vunpack.c.l.b16 %v43
  %v192 = vunpack.c.l.b16 %v44
  %v193 = vunpack.c.l.b16 %v45
  %v194 = vunpack.c.l.b16 %v46
  %v195 = vunpack.c.l.b16 %v47
  %v196 = vunpack.c.l.b16 %v48
  %v197 = vunpack.c.l.b16 %v49
  %v198 = vunpack.c.l.b16 %v50
  %v199 = vunpack.c.l.b16 %v51
  %v200 = vunpack.c.l.b16 %v52
  %v201 = vunpack.c.l.b16 %v53
  %v202 = vunpack.c.l.b16 %v54
  %v203 = vunpack.c.l.b16 %v55
  %v204 = vunpack.c.l.b16 %v56
  %v205 = vunpack.c.l.b16 %v57
  %v206 = vunpack.c.l.b16 %v58
  %v207 = vunpack.c.l.b16 %v59
  %v208 = vunpack.c.l.b16 %v60
  %v209 = vunpack.c.l.b16 %v61
  %v210 = vunpack.c.l.b16 %v62
  %v211 = vunpack.c.l.b16 %v63
  %v212 = vunpack.c.l.b16 %v64
  %v213 = vunpack.c.l.b16 %v65
  %v214 = vunpack.c.l.b16 %v66
  %v215 = vunpack.c.l.b16 %v67
  %v216 = vunpack.c.l.b16 %v68
  %v217 = vunpack.c.l.b16 %v69
  %v218 = vunpack.c.l.b16 %v70
  %v219 = vunpack.c.l.b16 %v71
  %v220 = vunpack.c.l.b16 %v72
  %v221 = vunpack.c.l.b16 %v73
  %v222 = vunpack.c.l.b16 %v74
  %v223 = vunpack.c.l.b16 %v75
  %v224 = vunpack.c.l.b16 %v76
  %v225 = vunpack.c.l.b16 %v77
  %v226 = vpack.c.b16 %v163, %v162
  %v227 = vpack.c.b16 %v165, %v164
  %v228 = vpack.c.b16 %v167, %v166
  %v229 = vpack.c.b16 %v169, %v168
  %v230 = vpack.c.b16 %v171, %v170
  %v231 = vpack.c.b16 %v173, %v172
  %v232 = vpack.c.b16 %v175, %v174
  %v233 = vpack.c.b16 %v177, %v176
  %v234 = vpack.c.b16 %v179, %v178
  %v235 = vpack.c.b16 %v181, %v180
  %v236 = vpack.c.b16 %v183, %v182
  %v237 = vpack.c.b16 %v185, %v184
  %v238 = vpack.c.b16 %v187, %v186
  %v239 = vpack.c.b16 %v189, %v188
  %v240 = vpack.c.b16 %v191, %v190
  %v241 = vpack.c.b16 %v193, %v192
  %v242 = vpack.c.b16 %v195, %v194
  %v243 = vpack.c.b16 %v197, %v196
  %v244 = vpack.c.b16 %v199, %v198
  %v245 = vpack.c.b16 %v201, %v200
  %v246 = vpack.c.b16 %v203, %v202
  %v247 = vpack.c.b16 %v205, %v204
  %v248 = vpack.c.b16 %v207, %v206
  %v249 = vpack.c.b16 %v209, %v208
  %v250 = vpack.c.b16 %v211, %v210
  %v251 = vpack.c.b16 %v213, %v212
  %v252 = vpack.c.b16 %v215, %v214
  %v253 = vpack.c.b16 %v217, %v216
  %v254 = vpack.c.b16 %v219, %v218
  %v255 = vpack.c.b16 %v221, %v220
  %v256 = vpack.c.b16 %v223, %v222
  %v257 = vpack.c.b16 %v225, %v224
  %v306 = vunpack.c.l.b16 %v78
  %v307 = vunpack.c.l.b16 %v79
  %v308 = vunpack.c.l.b16 %v80
  %v309 = vunpack.c.l.b16 %v81
  %v310 = vunpack.c.l.b16 %v82
  %v311 = vunpack.c.l.b16 %v83
  %v312 = vunpack.c.l.b16 %v84
  %v313 = vunpack.c.l.b16 %v85
  %v314 = vunpack.c.l.b16 %v86
  %v315 = vunpack.c.l.b16 %v87
  %v316 = vunpack.c.l.b16 %v88
  %v317 = vunpack.c.l.b16 %v89
  %v318 = vunpack.c.l.b16 %v90
  %v319 = vunpack.c.l.b16 %v91
  %v320 = vunpack.c.l.b16 %v92
  %v321 = vunpack.c.l.b16 %v93
  %v322 = vpack.c.b16 %v307, %v306
  %v323 = vpack.c.b16 %v309, %v308
  %v324 = vpack.c.b16 %v311, %v310
  %v325 = vpack.c.b16 %v313, %v312
  %v326 = vpack.c.b16 %v315, %v314
  %v327 = vpack.c.b16 %v317, %v316
  %v328 = vpack.c.b16 %v319, %v318
  %v329 = vpack.c.b16 %v321, %v320
  %338 = vmatpush.bf16.msra.mxu0 %v329
  %339 = vmatpush.bf16.msra.mxu0 %v328
  %340 = vmatpush.bf16.msra.mxu0 %v327
  %341 = vmatpush.bf16.msra.mxu0 %v326
  %342 = vmatpush.bf16.msra.mxu0 %v325
  %343 = vmatpush.bf16.msra.mxu0 %v324
  %344 = vmatpush.bf16.msra.mxu0 %v323
  %345 = vmatpush.bf16.msra.mxu0 %v322
  %346 = vmatmul.bf16.gmra.mxu0 %v226
  %v347 = vpop.f32.mrf.mxu0
  %v348 = vadd.f32 %v96, %v347
  %v349 = vpop.f32.mrf.mxu0
  %v350 = vadd.f32 %v96, %v349
  %351 = vmatmul.bf16.gmra.mxu0 %v227
  %v352 = vpop.f32.mrf.mxu0
  %v353 = vadd.f32 %v96, %v352
  %v354 = vpop.f32.mrf.mxu0
  %v355 = vadd.f32 %v96, %v354
  %356 = vmatmul.bf16.gmra.mxu0 %v228
  %v357 = vpop.f32.mrf.mxu0
  %v358 = vadd.f32 %v96, %v357
  %v359 = vpop.f32.mrf.mxu0
  %v360 = vadd.f32 %v96, %v359
  %361 = vmatmul.bf16.gmra.mxu0 %v229
  %v362 = vpop.f32.mrf.mxu0
  %v363 = vadd.f32 %v96, %v362
  %v364 = vpop.f32.mrf.mxu0
  %v365 = vadd.f32 %v96, %v364
  %366 = vmatmul.bf16.gmra.mxu0 %v230
  %v367 = vpop.f32.mrf.mxu0
  %v368 = vadd.f32 %v96, %v367
  %v369 = vpop.f32.mrf.mxu0
  %v370 = vadd.f32 %v96, %v369
  %371 = vmatmul.bf16.gmra.mxu0 %v231
  %v372 = vpop.f32.mrf.mxu0
  %v373 = vadd.f32 %v96, %v372
  %v374 = vpop.f32.mrf.mxu0
  %v375 = vadd.f32 %v96, %v374
  %376 = vmatmul.bf16.gmra.mxu0 %v232
  %v377 = vpop.f32.mrf.mxu0
  %v378 = vadd.f32 %v96, %v377
  %v379 = vpop.f32.mrf.mxu0
  %v380 = vadd.f32 %v96, %v379
  %381 = vmatmul.bf16.gmra.mxu0 %v233
  %v382 = vpop.f32.mrf.mxu0
  %v383 = vadd.f32 %v96, %v382
  %v384 = vpop.f32.mrf.mxu0
  %v385 = vadd.f32 %v96, %v384
  %386 = vmatmul.bf16.gmra.mxu0 %v234
  %v387 = vpop.f32.mrf.mxu0
  %v388 = vadd.f32 %v96, %v387
  %v389 = vpop.f32.mrf.mxu0
  %v390 = vadd.f32 %v96, %v389
  %391 = vmatmul.bf16.gmra.mxu0 %v235
  %v392 = vpop.f32.mrf.mxu0
  %v393 = vadd.f32 %v96, %v392
  %v394 = vpop.f32.mrf.mxu0
  %v395 = vadd.f32 %v96, %v394
  %396 = vmatmul.bf16.gmra.mxu0 %v236
  %v397 = vpop.f32.mrf.mxu0
  %v398 = vadd.f32 %v96, %v397
  %v399 = vpop.f32.mrf.mxu0
  %v400 = vadd.f32 %v96, %v399
  %401 = vmatmul.bf16.gmra.mxu0 %v237
  %v402 = vpop.f32.mrf.mxu0
  %v403 = vadd.f32 %v96, %v402
  %v404 = vpop.f32.mrf.mxu0
  %v405 = vadd.f32 %v96, %v404
  %406 = vmatmul.bf16.gmra.mxu0 %v238
  %v407 = vpop.f32.mrf.mxu0
  %v408 = vadd.f32 %v96, %v407
  %v409 = vpop.f32.mrf.mxu0
  %v410 = vadd.f32 %v96, %v409
  %411 = vmatmul.bf16.gmra.mxu0 %v239
  %v412 = vpop.f32.mrf.mxu0
  %v413 = vadd.f32 %v96, %v412
  %v414 = vpop.f32.mrf.mxu0
  %v415 = vadd.f32 %v96, %v414
  %416 = vmatmul.bf16.gmra.mxu0 %v240
  %v417 = vpop.f32.mrf.mxu0
  %v418 = vadd.f32 %v96, %v417
  %v419 = vpop.f32.mrf.mxu0
  %v420 = vadd.f32 %v96, %v419
  %421 = vmatmul.bf16.gmra.mxu0 %v241
  %v422 = vpop.f32.mrf.mxu0
  %v423 = vadd.f32 %v96, %v422
  %v424 = vpop.f32.mrf.mxu0
  %v425 = vadd.f32 %v96, %v424
  %426 = vmatmul.bf16.gmra.mxu0 %v242
  %v427 = vpop.f32.mrf.mxu0
  %v428 = vadd.f32 %v96, %v427
  %v429 = vpop.f32.mrf.mxu0
  %v430 = vadd.f32 %v96, %v429
  %431 = vmatmul.bf16.gmra.mxu0 %v243
  %v432 = vpop.f32.mrf.mxu0
  %v433 = vadd.f32 %v96, %v432
  %v434 = vpop.f32.mrf.mxu0
  %v435 = vadd.f32 %v96, %v434
  %436 = vmatmul.bf16.gmra.mxu0 %v244
  %v437 = vpop.f32.mrf.mxu0
  %v438 = vadd.f32 %v96, %v437
  %v439 = vpop.f32.mrf.mxu0
  %v440 = vadd.f32 %v96, %v439
  %441 = vmatmul.bf16.gmra.mxu0 %v245
  %v442 = vpop.f32.mrf.mxu0
  %v443 = vadd.f32 %v96, %v442
  %v444 = vpop.f32.mrf.mxu0
  %v445 = vadd.f32 %v96, %v444
  %446 = vmatmul.bf16.gmra.mxu0 %v246
  %v447 = vpop.f32.mrf.mxu0
  %v448 = vadd.f32 %v96, %v447
  %v449 = vpop.f32.mrf.mxu0
  %v450 = vadd.f32 %v96, %v449
  %451 = vmatmul.bf16.gmra.mxu0 %v247
  %v452 = vpop.f32.mrf.mxu0
  %v453 = vadd.f32 %v96, %v452
  %v454 = vpop.f32.mrf.mxu0
  %v455 = vadd.f32 %v96, %v454
  %456 = vmatmul.bf16.gmra.mxu0 %v248
  %v457 = vpop.f32.mrf.mxu0
  %v458 = vadd.f32 %v96, %v457
  %v459 = vpop.f32.mrf.mxu0
  %v460 = vadd.f32 %v96, %v459
  %461 = vmatmul.bf16.gmra.mxu0 %v249
  %v462 = vpop.f32.mrf.mxu0
  %v463 = vadd.f32 %v96, %v462
  %v464 = vpop.f32.mrf.mxu0
  %v465 = vadd.f32 %v96, %v464
  %466 = vmatmul.bf16.gmra.mxu0 %v250
  %v467 = vpop.f32.mrf.mxu0
  %v468 = vadd.f32 %v96, %v467
  %v469 = vpop.f32.mrf.mxu0
  %v470 = vadd.f32 %v96, %v469
  %471 = vmatmul.bf16.gmra.mxu0 %v251
  %v472 = vpop.f32.mrf.mxu0
  %v473 = vadd.f32 %v96, %v472
  %v474 = vpop.f32.mrf.mxu0
  %v475 = vadd.f32 %v96, %v474
  %476 = vmatmul.bf16.gmra.mxu0 %v252
  %v477 = vpop.f32.mrf.mxu0
  %v478 = vadd.f32 %v96, %v477
  %v479 = vpop.f32.mrf.mxu0
  %v480 = vadd.f32 %v96, %v479
  %481 = vmatmul.bf16.gmra.mxu0 %v253
  %v482 = vpop.f32.mrf.mxu0
  %v483 = vadd.f32 %v96, %v482
  %v484 = vpop.f32.mrf.mxu0
  %v485 = vadd.f32 %v96, %v484
  %486 = vmatmul.bf16.gmra.mxu0 %v254
  %v487 = vpop.f32.mrf.mxu0
  %v488 = vadd.f32 %v96, %v487
  %v489 = vpop.f32.mrf.mxu0
  %v490 = vadd.f32 %v96, %v489
  %491 = vmatmul.bf16.gmra.mxu0 %v255
  %v492 = vpop.f32.mrf.mxu0
  %v493 = vadd.f32 %v96, %v492
  %v494 = vpop.f32.mrf.mxu0
  %v495 = vadd.f32 %v96, %v494
  %496 = vmatmul.bf16.gmra.mxu0 %v256
  %v497 = vpop.f32.mrf.mxu0
  %v498 = vadd.f32 %v96, %v497
  %v499 = vpop.f32.mrf.mxu0
  %v500 = vadd.f32 %v96, %v499
  %501 = vmatmul.bf16.gmra.mxu0 %v257
  %v502 = vpop.f32.mrf.mxu0
  %v503 = vadd.f32 %v96, %v502
  %v504 = vpop.f32.mrf.mxu0
  %v505 = vadd.f32 %v96, %v504
  %506 = vdwg.mxu0
  %v507 = vpack.c.bf16 %v348, %v348
  %v508 = vpack.c.bf16 %v350, %v350
  %v509 = vpack.c.bf16 %v353, %v353
  %v510 = vpack.c.bf16 %v355, %v355
  %v511 = vpack.c.bf16 %v358, %v358
  %v512 = vpack.c.bf16 %v360, %v360
  %v513 = vpack.c.bf16 %v363, %v363
  %v514 = vpack.c.bf16 %v365, %v365
  %v515 = vpack.c.bf16 %v368, %v368
  %v516 = vpack.c.bf16 %v370, %v370
  %v517 = vpack.c.bf16 %v373, %v373
  %v518 = vpack.c.bf16 %v375, %v375
  %v519 = vpack.c.bf16 %v378, %v378
  %v520 = vpack.c.bf16 %v380, %v380
  %v521 = vpack.c.bf16 %v383, %v383
  %v522 = vpack.c.bf16 %v385, %v385
  %v523 = vpack.c.bf16 %v388, %v388
  %v524 = vpack.c.bf16 %v390, %v390
  %v525 = vpack.c.bf16 %v393, %v393
  %v526 = vpack.c.bf16 %v395, %v395
  %v527 = vpack.c.bf16 %v398, %v398
  %v528 = vpack.c.bf16 %v400, %v400
  %v529 = vpack.c.bf16 %v403, %v403
  %v530 = vpack.c.bf16 %v405, %v405
  %v531 = vpack.c.bf16 %v408, %v408
  %v532 = vpack.c.bf16 %v410, %v410
  %v533 = vpack.c.bf16 %v413, %v413
  %v534 = vpack.c.bf16 %v415, %v415
  %v535 = vpack.c.bf16 %v418, %v418
  %v536 = vpack.c.bf16 %v420, %v420
  %v537 = vpack.c.bf16 %v423, %v423
  %v538 = vpack.c.bf16 %v425, %v425
  %v539 = vpack.c.bf16 %v428, %v428
  %v540 = vpack.c.bf16 %v430, %v430
  %v541 = vpack.c.bf16 %v433, %v433
  %v542 = vpack.c.bf16 %v435, %v435
  %v543 = vpack.c.bf16 %v438, %v438
  %v544 = vpack.c.bf16 %v440, %v440
  %v545 = vpack.c.bf16 %v443, %v443
  %v546 = vpack.c.bf16 %v445, %v445
  %v547 = vpack.c.bf16 %v448, %v448
  %v548 = vpack.c.bf16 %v450, %v450
  %v549 = vpack.c.bf16 %v453, %v453
  %v550 = vpack.c.bf16 %v455, %v455
  %v551 = vpack.c.bf16 %v458, %v458
  %v552 = vpack.c.bf16 %v460, %v460
  %v553 = vpack.c.bf16 %v463, %v463
  %v554 = vpack.c.bf16 %v465, %v465
  %v555 = vpack.c.bf16 %v468, %v468
  %v556 = vpack.c.bf16 %v470, %v470
  %v557 = vpack.c.bf16 %v473, %v473
  %v558 = vpack.c.bf16 %v475, %v475
  %v559 = vpack.c.bf16 %v478, %v478
  %v560 = vpack.c.bf16 %v480, %v480
  %v561 = vpack.c.bf16 %v483, %v483
  %v562 = vpack.c.bf16 %v485, %v485
  %v563 = vpack.c.bf16 %v488, %v488
  %v564 = vpack.c.bf16 %v490, %v490
  %v565 = vpack.c.bf16 %v493, %v493
  %v566 = vpack.c.bf16 %v495, %v495
  %v567 = vpack.c.bf16 %v498, %v498
  %v568 = vpack.c.bf16 %v500, %v500
  %v569 = vpack.c.bf16 %v503, %v503
  %v570 = vpack.c.bf16 %v505, %v505
  %571 = vst [vmem:[%s3] sm:$0xf] %v507
  %572 = vst [vmem:[%s3 + $0x4] sm:$0xf] %v508
  %573 = vst [vmem:[%s3 + $0x8] sm:$0xf] %v509
  %574 = vst [vmem:[%s3 + $0xc] sm:$0xf] %v510
  %575 = vst [vmem:[%s3 + $0x10] sm:$0xf] %v511
  %576 = vst [vmem:[%s3 + $0x14] sm:$0xf] %v512
  %577 = vst [vmem:[%s3 + $0x18] sm:$0xf] %v513
  %578 = vst [vmem:[%s3 + $0x1c] sm:$0xf] %v514
  %579 = vst [vmem:[%s3 + $0x20] sm:$0xf] %v515
  %580 = vst [vmem:[%s3 + $0x24] sm:$0xf] %v516
  %581 = vst [vmem:[%s3 + $0x28] sm:$0xf] %v517
  %582 = vst [vmem:[%s3 + $0x2c] sm:$0xf] %v518
  %583 = vst [vmem:[%s3 + $0x30] sm:$0xf] %v519
  %584 = vst [vmem:[%s3 + $0x34] sm:$0xf] %v520
  %585 = vst [vmem:[%s3 + $0x38] sm:$0xf] %v521
  %586 = vst [vmem:[%s3 + $0x3c] sm:$0xf] %v522
  %587 = vst [vmem:[%s3 + $0x40] sm:$0xf] %v523
  %588 = vst [vmem:[%s3 + $0x44] sm:$0xf] %v524
  %589 = vst [vmem:[%s3 + $0x48] sm:$0xf] %v525
  %590 = vst [vmem:[%s3 + $0x4c] sm:$0xf] %v526
  %591 = vst [vmem:[%s3 + $0x50] sm:$0xf] %v527
  %592 = vst [vmem:[%s3 + $0x54] sm:$0xf] %v528
  %593 = vst [vmem:[%s3 + $0x58] sm:$0xf] %v529
  %594 = vst [vmem:[%s3 + $0x5c] sm:$0xf] %v530
  %595 = vst [vmem:[%s3 + $0x60] sm:$0xf] %v531
  %596 = vst [vmem:[%s3 + $0x64] sm:$0xf] %v532
  %597 = vst [vmem:[%s3 + $0x68] sm:$0xf] %v533
  %598 = vst [vmem:[%s3 + $0x6c] sm:$0xf] %v534
  %599 = vst [vmem:[%s3 + $0x70] sm:$0xf] %v535
  %600 = vst [vmem:[%s3 + $0x74] sm:$0xf] %v536
  %601 = vst [vmem:[%s3 + $0x78] sm:$0xf] %v537
  %602 = vst [vmem:[%s3 + $0x7c] sm:$0xf] %v538
  %603 = vst [vmem:[%s3 + $0x80] sm:$0xf] %v539
  %604 = vst [vmem:[%s3 + $0x84] sm:$0xf] %v540
  %605 = vst [vmem:[%s3 + $0x88] sm:$0xf] %v541
  %606 = vst [vmem:[%s3 + $0x8c] sm:$0xf] %v542
  %607 = vst [vmem:[%s3 + $0x90] sm:$0xf] %v543
  %608 = vst [vmem:[%s3 + $0x94] sm:$0xf] %v544
  %609 = vst [vmem:[%s3 + $0x98] sm:$0xf] %v545
  %610 = vst [vmem:[%s3 + $0x9c] sm:$0xf] %v546
  %611 = vst [vmem:[%s3 + $0xa0] sm:$0xf] %v547
  %612 = vst [vmem:[%s3 + $0xa4] sm:$0xf] %v548
  %613 = vst [vmem:[%s3 + $0xa8] sm:$0xf] %v549
  %614 = vst [vmem:[%s3 + $0xac] sm:$0xf] %v550
  %615 = vst [vmem:[%s3 + $0xb0] sm:$0xf] %v551
  %616 = vst [vmem:[%s3 + $0xb4] sm:$0xf] %v552
  %617 = vst [vmem:[%s3 + $0xb8] sm:$0xf] %v553
  %618 = vst [vmem:[%s3 + $0xbc] sm:$0xf] %v554
  %619 = vst [vmem:[%s3 + $0xc0] sm:$0xf] %v555
  %620 = vst [vmem:[%s3 + $0xc4] sm:$0xf] %v556
  %621 = vst [vmem:[%s3 + $0xc8] sm:$0xf] %v557
  %622 = vst [vmem:[%s3 + $0xcc] sm:$0xf] %v558
  %623 = vst [vmem:[%s3 + $0xd0] sm:$0xf] %v559
  %624 = vst [vmem:[%s3 + $0xd4] sm:$0xf] %v560
  %625 = vst [vmem:[%s3 + $0xd8] sm:$0xf] %v561
  %626 = vst [vmem:[%s3 + $0xdc] sm:$0xf] %v562
  %627 = vst [vmem:[%s3 + $0xe0] sm:$0xf] %v563
  %628 = vst [vmem:[%s3 + $0xe4] sm:$0xf] %v564
  %629 = vst [vmem:[%s3 + $0xe8] sm:$0xf] %v565
  %630 = vst [vmem:[%s3 + $0xec] sm:$0xf] %v566
  %631 = vst [vmem:[%s3 + $0xf0] sm:$0xf] %v567
  %632 = vst [vmem:[%s3 + $0xf4] sm:$0xf] %v568
  %633 = vst [vmem:[%s3 + $0xf8] sm:$0xf] %v569
  %634 = vst [vmem:[%s3 + $0xfc] sm:$0xf] %v570
  // Predicated region
  $region14: #{unet_forward.5} parent=0 // pred_check
    _
  $region15: #{unet_forward.5} parent=0 // pred_check_branch
    %636 = sbr.rel (0) target = $region17
  $region16: #{unet_forward.5} parent=0 // pred_region
    _
  $region17: #{unet_forward.5} parent=0 // pred_fallthru
    _
  // Predicated region
  $region18: #{unet_forward.5} parent=0 // pred_check
    _
  $region19: #{unet_forward.5} parent=0 // pred_check_branch
    %638 = sbr.rel (0) target = $region21
  $region20: #{unet_forward.5} parent=0 // pred_region
    _
  $region21: #{unet_forward.5} parent=0 // pred_fallthru
    _

// kernel: unet_forward.6
$region0: #{unet_forward.6}
  #allocation0 [shape = 'u32[]', space=smem, size = 0x4, offset = 0x4, fixed_abs, tag = 'smem constant byte address 0x4 - core index']
  #allocation1 [shape = 'u32[72,128]{1,0:T(1,128)}', space=vmem, size = 0x9000, scoped, tag = 'internal scratch']
  %s0 = inlined_call_operand.vmem [shape: bf16[128,128], index: 0, kind: input, shape index: {}]
  %s1 = inlined_call_operand.vmem [shape: bf16[128,128], index: 1, kind: input, shape index: {}]
  %s2 = inlined_call_operand.vmem [shape: f32[1,128], index: 2, kind: input, shape index: {}]
  %s3 = inlined_call_operand.vmem [shape: bf16[128,128], index: 3, kind: output, shape index: {0}]
  %s4 = inlined_call_operand.vmem [shape: f32[8,128], index: 4, kind: output, shape index: {1}]
  %s5 = inlined_call_operand.vmem [shape: f32[8,128], index: 5, kind: output, shape index: {2}]
  %6 = xla_tuple %s3, %s4, %s5
  %s7 = sld [smem:[#allocation0]]
  $region38: #{unet_forward.6} parent=0
    _
  %s9 = ssub.s32 1, %s7
  %s10 = scalar_select 0, %s9, %s7
  // Predicated region
  $region2: #{unet_forward.6} parent=0 // pred_check
    _
  $region3: #{unet_forward.6} parent=0 // pred_check_branch
    %12 = sbr.rel (0) target = $region5
  $region4: #{unet_forward.6} parent=0 // pred_region
    _
  $region5: #{unet_forward.6} parent=0 // pred_fallthru
    _
  // Predicated region
  $region6: #{unet_forward.6} parent=0 // pred_check
    _
  $region7: #{unet_forward.6} parent=0 // pred_check_branch
    %14 = sbr.rel (0) target = $region9
  $region8: #{unet_forward.6} parent=0 // pred_region
    _
  $region9: #{unet_forward.6} parent=0 // pred_fallthru
    _
  // Predicated region
  $region10: #{unet_forward.6} parent=0 // pred_check
    _
  $region11: #{unet_forward.6} parent=0 // pred_check_branch
    %16 = sbr.rel (0) target = $region13
  $region12: #{unet_forward.6} parent=0 // pred_region
    _
  $region13: #{unet_forward.6} parent=0 // pred_fallthru
    _
  %v17 = vld [vmem:[%s0] sm:$0xf]
  %v18 = vld [vmem:[%s0 + $0x4] sm:$0xf]
  %v19 = vld [vmem:[%s0 + $0x8] sm:$0xf]
  %v20 = vld [vmem:[%s0 + $0xc] sm:$0xf]
  %v21 = vld [vmem:[%s0 + $0x10] sm:$0xf]
  %v22 = vld [vmem:[%s0 + $0x14] sm:$0xf]
  %v23 = vld [vmem:[%s0 + $0x18] sm:$0xf]
  %v24 = vld [vmem:[%s0 + $0x1c] sm:$0xf]
  %v25 = vld [vmem:[%s0 + $0x20] sm:$0xf]
  %v26 = vld [vmem:[%s0 + $0x24] sm:$0xf]
  %v27 = vld [vmem:[%s0 + $0x28] sm:$0xf]
  %v28 = vld [vmem:[%s0 + $0x2c] sm:$0xf]
  %v29 = vld [vmem:[%s0 + $0x30] sm:$0xf]
  %v30 = vld [vmem:[%s0 + $0x34] sm:$0xf]
  %v31 = vld [vmem:[%s0 + $0x38] sm:$0xf]
  %v32 = vld [vmem:[%s0 + $0x3c] sm:$0xf]
  %v33 = vld [vmem:[%s1] sm:$0xf]
  %v34 = vld [vmem:[%s1 + $0x4] sm:$0xf]
  %v35 = vld [vmem:[%s1 + $0x8] sm:$0xf]
  %v36 = vld [vmem:[%s1 + $0xc] sm:$0xf]
  %v37 = vld [vmem:[%s1 + $0x10] sm:$0xf]
  %v38 = vld [vmem:[%s1 + $0x14] sm:$0xf]
  %v39 = vld [vmem:[%s1 + $0x18] sm:$0xf]
  %v40 = vld [vmem:[%s1 + $0x1c] sm:$0xf]
  %v41 = vld [vmem:[%s1 + $0x20] sm:$0xf]
  %v42 = vld [vmem:[%s1 + $0x24] sm:$0xf]
  %v43 = vld [vmem:[%s1 + $0x28] sm:$0xf]
  %v44 = vld [vmem:[%s1 + $0x2c] sm:$0xf]
  %v45 = vld [vmem:[%s1 + $0x30] sm:$0xf]
  %v46 = vld [vmem:[%s1 + $0x34] sm:$0xf]
  %v47 = vld [vmem:[%s1 + $0x38] sm:$0xf]
  %v48 = vld [vmem:[%s1 + $0x3c] sm:$0xf]
  %v49 = vld [vmem:[%s2] sm:$0x1]
  %v51 = vperm.slane %v49, 0
  %v69 = vunpack.c.l.b16 %v17
  %v70 = vunpack.c.l.b16 %v18
  %v71 = vunpack.c.l.b16 %v19
  %v72 = vunpack.c.l.b16 %v20
  %v73 = vunpack.c.l.b16 %v21
  %v74 = vunpack.c.l.b16 %v22
  %v75 = vunpack.c.l.b16 %v23
  %v76 = vunpack.c.l.b16 %v24
  %v77 = vunpack.c.l.b16 %v25
  %v78 = vunpack.c.l.b16 %v26
  %v79 = vunpack.c.l.b16 %v27
  %v80 = vunpack.c.l.b16 %v28
  %v81 = vunpack.c.l.b16 %v29
  %v82 = vunpack.c.l.b16 %v30
  %v83 = vunpack.c.l.b16 %v31
  %v84 = vunpack.c.l.b16 %v32
  %v85 = vpack.c.b16 %v70, %v69
  %v86 = vpack.c.b16 %v72, %v71
  %v87 = vpack.c.b16 %v74, %v73
  %v88 = vpack.c.b16 %v76, %v75
  %v89 = vpack.c.b16 %v78, %v77
  %v90 = vpack.c.b16 %v80, %v79
  %v91 = vpack.c.b16 %v82, %v81
  %v92 = vpack.c.b16 %v84, %v83
  %v117 = vunpack.c.l.b16 %v33
  %v118 = vunpack.c.l.b16 %v34
  %v119 = vunpack.c.l.b16 %v35
  %v120 = vunpack.c.l.b16 %v36
  %v121 = vunpack.c.l.b16 %v37
  %v122 = vunpack.c.l.b16 %v38
  %v123 = vunpack.c.l.b16 %v39
  %v124 = vunpack.c.l.b16 %v40
  %v125 = vunpack.c.l.b16 %v41
  %v126 = vunpack.c.l.b16 %v42
  %v127 = vunpack.c.l.b16 %v43
  %v128 = vunpack.c.l.b16 %v44
  %v129 = vunpack.c.l.b16 %v45
  %v130 = vunpack.c.l.b16 %v46
  %v131 = vunpack.c.l.b16 %v47
  %v132 = vunpack.c.l.b16 %v48
  %v133 = vpack.c.b16 %v118, %v117
  %v134 = vpack.c.b16 %v120, %v119
  %v135 = vpack.c.b16 %v122, %v121
  %v136 = vpack.c.b16 %v124, %v123
  %v137 = vpack.c.b16 %v126, %v125
  %v138 = vpack.c.b16 %v128, %v127
  %v139 = vpack.c.b16 %v130, %v129
  %v140 = vpack.c.b16 %v132, %v131
  %149 = vmatpush.bf16.msra.mxu0 %v140
  %150 = vmatpush.bf16.msra.mxu0 %v139
  %151 = vmatpush.bf16.msra.mxu0 %v138
  %152 = vmatpush.bf16.msra.mxu0 %v137
  %153 = vmatpush.bf16.msra.mxu0 %v136
  %154 = vmatpush.bf16.msra.mxu0 %v135
  %155 = vmatpush.bf16.msra.mxu0 %v134
  %156 = vmatpush.bf16.msra.mxu0 %v133
  %157 = vmatmul.bf16.gmra.mxu0 %v85
  %v158 = vpop.f32.mrf.mxu0
  %v159 = vadd.f32 %v51, %v158
  %v160 = vpop.f32.mrf.mxu0
  %v161 = vadd.f32 %v51, %v160
  %162 = vmatmul.bf16.gmra.mxu0 %v86
  %v163 = vpop.f32.mrf.mxu0
  %v164 = vadd.f32 %v51, %v163
  %v165 = vpop.f32.mrf.mxu0
  %v166 = vadd.f32 %v51, %v165
  %167 = vmatmul.bf16.gmra.mxu0 %v87
  %v168 = vpop.f32.mrf.mxu0
  %v169 = vadd.f32 %v51, %v168
  %v170 = vpop.f32.mrf.mxu0
  %v171 = vadd.f32 %v51, %v170
  %172 = vmatmul.bf16.gmra.mxu0 %v88
  %v173 = vpop.f32.mrf.mxu0
  %v174 = vadd.f32 %v51, %v173
  %v175 = vpop.f32.mrf.mxu0
  %v176 = vadd.f32 %v51, %v175
  %177 = vmatmul.bf16.gmra.mxu0 %v89
  %v178 = vpop.f32.mrf.mxu0
  %v179 = vadd.f32 %v51, %v178
  %v180 = vpop.f32.mrf.mxu0
  %v181 = vadd.f32 %v51, %v180
  %182 = vmatmul.bf16.gmra.mxu0 %v90
  %v183 = vpop.f32.mrf.mxu0
  %v184 = vadd.f32 %v51, %v183
  %v185 = vpop.f32.mrf.mxu0
  %v186 = vadd.f32 %v51, %v185
  %187 = vmatmul.bf16.gmra.mxu0 %v91
  %v188 = vpop.f32.mrf.mxu0
  %v189 = vadd.f32 %v51, %v188
  %v190 = vpop.f32.mrf.mxu0
  %v191 = vadd.f32 %v51, %v190
  %192 = vmatmul.bf16.gmra.mxu0 %v92
  %v193 = vpop.f32.mrf.mxu0
  %v194 = vadd.f32 %v51, %v193
  %v195 = vpop.f32.mrf.mxu0
  %v196 = vadd.f32 %v51, %v195
  %197 = vdwg.mxu0
  %v198 = vpack.c.bf16 %v159, %v159
  %v199 = vpack.c.bf16 %v161, %v161
  %v200 = vpack.c.bf16 %v164, %v164
  %v201 = vpack.c.bf16 %v166, %v166
  %v202 = vpack.c.bf16 %v169, %v169
  %v203 = vpack.c.bf16 %v171, %v171
  %v204 = vpack.c.bf16 %v174, %v174
  %v205 = vpack.c.bf16 %v176, %v176
  %v206 = vpack.c.bf16 %v179, %v179
  %v207 = vpack.c.bf16 %v181, %v181
  %v208 = vpack.c.bf16 %v184, %v184
  %v209 = vpack.c.bf16 %v186, %v186
  %v210 = vpack.c.bf16 %v189, %v189
  %v211 = vpack.c.bf16 %v191, %v191
  %v212 = vpack.c.bf16 %v194, %v194
  %v213 = vpack.c.bf16 %v196, %v196
  %214 = vst [vmem:[%s3] sm:$0xf] %v198
  %215 = vst [vmem:[%s3 + $0x4] sm:$0xf] %v199
  %216 = vst [vmem:[%s3 + $0x8] sm:$0xf] %v200
  %217 = vst [vmem:[%s3 + $0xc] sm:$0xf] %v201
  %218 = vst [vmem:[%s3 + $0x10] sm:$0xf] %v202
  %219 = vst [vmem:[%s3 + $0x14] sm:$0xf] %v203
  %220 = vst [vmem:[%s3 + $0x18] sm:$0xf] %v204
  %221 = vst [vmem:[%s3 + $0x1c] sm:$0xf] %v205
  %222 = vst [vmem:[%s3 + $0x20] sm:$0xf] %v206
  %223 = vst [vmem:[%s3 + $0x24] sm:$0xf] %v207
  %224 = vst [vmem:[%s3 + $0x28] sm:$0xf] %v208
  %225 = vst [vmem:[%s3 + $0x2c] sm:$0xf] %v209
  %226 = vst [vmem:[%s3 + $0x30] sm:$0xf] %v210
  %227 = vst [vmem:[%s3 + $0x34] sm:$0xf] %v211
  %228 = vst [vmem:[%s3 + $0x38] sm:$0xf] %v212
  %229 = vst [vmem:[%s3 + $0x3c] sm:$0xf] %v213
  %v230 = vadd.f32 %v159, %v161
  %v231 = vadd.f32 %v230, %v164
  %v232 = vadd.f32 %v231, %v166
  %v233 = vadd.f32 %v232, %v169
  %v234 = vadd.f32 %v233, %v171
  %v235 = vadd.f32 %v234, %v174
  %v236 = vadd.f32 %v235, %v176
  %v237 = vadd.f32 %v236, %v179
  %v238 = vadd.f32 %v237, %v181
  %v239 = vadd.f32 %v238, %v184
  %v240 = vadd.f32 %v239, %v186
  %v241 = vadd.f32 %v240, %v189
  %v242 = vadd.f32 %v241, %v191
  %v243 = vadd.f32 %v242, %v194
  %v244 = vadd.f32 %v243, %v196
  %v245 = vrot.slane %v244, 4
  %v246 = vadd.f32 %v244, %v245
  %v247 = vrot.slane %v246, 2
  %v248 = vadd.f32 %v246, %v247
  %v249 = vrot.slane %v248, 1
  %v250 = vadd.f32 %v248, %v249
  %v251 = vmul.f32 %v159, %v159
  %v252 = vmul.f32 %v161, %v161
  %v253 = vmul.f32 %v164, %v164
  %v254 = vmul.f32 %v166, %v166
  %v255 = vmul.f32 %v169, %v169
  %v256 = vmul.f32 %v171, %v171
  %v257 = vmul.f32 %v174, %v174
  %v258 = vmul.f32 %v176, %v176
  %v259 = vmul.f32 %v179, %v179
  %v260 = vmul.f32 %v181, %v181
  %v261 = vmul.f32 %v184, %v184
  %v262 = vmul.f32 %v186, %v186
  %v263 = vmul.f32 %v189, %v189
  %v264 = vmul.f32 %v191, %v191
  %v265 = vmul.f32 %v194, %v194
  %v266 = vmul.f32 %v196, %v196
  %v267 = vadd.f32 %v251, %v252
  %v268 = vadd.f32 %v267, %v253
  %v269 = vadd.f32 %v268, %v254
  %v270 = vadd.f32 %v269, %v255
  %v271 = vadd.f32 %v270, %v256
  %v272 = vadd.f32 %v271, %v257
  %v273 = vadd.f32 %v272, %v258
  %v274 = vadd.f32 %v273, %v259
  %v275 = vadd.f32 %v274, %v260
  %v276 = vadd.f32 %v275, %v261
  %v277 = vadd.f32 %v276, %v262
  %v278 = vadd.f32 %v277, %v263
  %v279 = vadd.f32 %v278, %v264
  %v280 = vadd.f32 %v279, %v265
  %v281 = vadd.f32 %v280, %v266
  %v282 = vrot.slane %v281, 4
  %v283 = vadd.f32 %v281, %v282
  %v284 = vrot.slane %v283, 2
  %v285 = vadd.f32 %v283, %v284
  %v286 = vrot.slane %v285, 1
  %v287 = vadd.f32 %v285, %v286
  %288 = vst [vmem:[%s4] sm:$0xff] %v250
  %289 = vst [vmem:[%s5] sm:$0xff] %v287
  // Predicated region
  $region14: #{unet_forward.6} parent=0 // pred_check
    _
  $region15: #{unet_forward.6} parent=0 // pred_check_branch
    %291 = sbr.rel (0) target = $region17
  $region16: #{unet_forward.6} parent=0 // pred_region
    _
  $region17: #{unet_forward.6} parent=0 // pred_fallthru
    _
  // Predicated region
  $region18: #{unet_forward.6} parent=0 // pred_check
    _
  $region19: #{unet_forward.6} parent=0 // pred_check_branch
    %293 = sbr.rel (0) target = $region21
  $region20: #{unet_forward.6} parent=0 // pred_region
    _
  $region21: #{unet_forward.6} parent=0 // pred_fallthru
    _
  // Predicated region
  $region22: #{unet_forward.6} parent=0 // pred_check
    _
  $region23: #{unet_forward.6} parent=0 // pred_check_branch
    %295 = sbr.rel (0) target = $region25
  $region24: #{unet_forward.6} parent=0 // pred_region
    _
  $region25: #{unet_forward.6} parent=0 // pred_fallthru
    _
  // Predicated region
  $region26: #{unet_forward.6} parent=0 // pred_check
    _
  $region27: #{unet_forward.6} parent=0 // pred_check_branch
    %297 = sbr.rel (0) target = $region29
  $region28: #{unet_forward.6} parent=0 // pred_region
    _
  $region29: #{unet_forward.6} parent=0 // pred_fallthru
    _
  // Predicated region
  $region30: #{unet_forward.6} parent=0 // pred_check
    _
  $region31: #{unet_forward.6} parent=0 // pred_check_branch
    %299 = sbr.rel (0) target = $region33
  $region32: #{unet_forward.6} parent=0 // pred_region
    _
  $region33: #{unet_forward.6} parent=0 // pred_fallthru
    _
  // Predicated region
  $region34: #{unet_forward.6} parent=0 // pred_check
    _
  $region35: #{unet_forward.6} parent=0 // pred_check_branch
    %301 = sbr.rel (0) target = $region37
  $region36: #{unet_forward.6} parent=0 // pred_region
    _
  $region37: #{unet_forward.6} parent=0 // pred_fallthru
    _

// kernel: unet_forward.7
$region0: #{unet_forward.7}
  #allocation0 [shape = 'u32[]', space=smem, size = 0x4, offset = 0x4, fixed_abs, tag = 'smem constant byte address 0x4 - core index']
  #allocation1 [shape = 'u32[72,128]{1,0:T(1,128)}', space=vmem, size = 0x9000, scoped, tag = 'internal scratch']
  %s0 = inlined_call_operand.vmem [shape: bf16[56,256], index: 0, kind: input, shape index: {}]
  %s1 = inlined_call_operand.vmem [shape: bf16[256,128], index: 1, kind: input, shape index: {}]
  %s2 = inlined_call_operand.vmem [shape: f32[1,128], index: 2, kind: input, shape index: {}]
  %s3 = inlined_call_operand.vmem [shape: bf16[56,128], index: 3, kind: output, shape index: {}]
  %s4 = sld [smem:[#allocation0]]
  $region22: #{unet_forward.7} parent=0
    _
  %s6 = ssub.s32 1, %s4
  %s7 = scalar_select 0, %s6, %s4
  // Predicated region
  $region2: #{unet_forward.7} parent=0 // pred_check
    _
  $region3: #{unet_forward.7} parent=0 // pred_check_branch
    %9 = sbr.rel (0) target = $region5
  $region4: #{unet_forward.7} parent=0 // pred_region
    _
  $region5: #{unet_forward.7} parent=0 // pred_fallthru
    _
  // Predicated region
  $region6: #{unet_forward.7} parent=0 // pred_check
    _
  $region7: #{unet_forward.7} parent=0 // pred_check_branch
    %11 = sbr.rel (0) target = $region9
  $region8: #{unet_forward.7} parent=0 // pred_region
    _
  $region9: #{unet_forward.7} parent=0 // pred_fallthru
    _
  // Predicated region
  $region10: #{unet_forward.7} parent=0 // pred_check
    _
  $region11: #{unet_forward.7} parent=0 // pred_check_branch
    %13 = sbr.rel (0) target = $region13
  $region12: #{unet_forward.7} parent=0 // pred_region
    _
  $region13: #{unet_forward.7} parent=0 // pred_fallthru
    _
  %v14 = vld [vmem:[%s0] sm:$0xff]
  %v15 = vld [vmem:[%s0 + $0x8] sm:$0xff]
  %v16 = vld [vmem:[%s0 + $0x10] sm:$0xff]
  %v17 = vld [vmem:[%s0 + $0x18] sm:$0xff]
  %v18 = vld [vmem:[%s0 + $0x20] sm:$0xff]
  %v19 = vld [vmem:[%s0 + $0x28] sm:$0xff]
  %v20 = vld [vmem:[%s0 + $0x30] sm:$0xff]
  %v21 = vld [vmem:[%s1] sm:$0xf]
  %v22 = vld [vmem:[%s1 + $0x4] sm:$0xf]
  %v23 = vld [vmem:[%s1 + $0x8] sm:$0xf]
  %v24 = vld [vmem:[%s1 + $0xc] sm:$0xf]
  %v25 = vld [vmem:[%s1 + $0x10] sm:$0xf]
  %v26 = vld [vmem:[%s1 + $0x14] sm:$0xf]
  %v27 = vld [vmem:[%s1 + $0x18] sm:$0xf]
  %v28 = vld [vmem:[%s1 + $0x1c] sm:$0xf]
  %v29 = vld [vmem:[%s1 + $0x20] sm:$0xf]
  %v30 = vld [vmem:[%s1 + $0x24] sm:$0xf]
  %v31 = vld [vmem:[%s1 + $0x28] sm:$0xf]
  %v32 = vld [vmem:[%s1 + $0x2c] sm:$0xf]
  %v33 = vld [vmem:[%s1 + $0x30] sm:$0xf]
  %v34 = vld [vmem:[%s1 + $0x34] sm:$0xf]
  %v35 = vld [vmem:[%s1 + $0x38] sm:$0xf]
  %v36 = vld [vmem:[%s1 + $0x3c] sm:$0xf]
  %v37 = vld [vmem:[%s1 + $0x40] sm:$0xf]
  %v38 = vld [vmem:[%s1 + $0x44] sm:$0xf]
  %v39 = vld [vmem:[%s1 + $0x48] sm:$0xf]
  %v40 = vld [vmem:[%s1 + $0x4c] sm:$0xf]
  %v41 = vld [vmem:[%s1 + $0x50] sm:$0xf]
  %v42 = vld [vmem:[%s1 + $0x54] sm:$0xf]
  %v43 = vld [vmem:[%s1 + $0x58] sm:$0xf]
  %v44 = vld [vmem:[%s1 + $0x5c] sm:$0xf]
  %v45 = vld [vmem:[%s1 + $0x60] sm:$0xf]
  %v46 = vld [vmem:[%s1 + $0x64] sm:$0xf]
  %v47 = vld [vmem:[%s1 + $0x68] sm:$0xf]
  %v48 = vld [vmem:[%s1 + $0x6c] sm:$0xf]
  %v49 = vld [vmem:[%s1 + $0x70] sm:$0xf]
  %v50 = vld [vmem:[%s1 + $0x74] sm:$0xf]
  %v51 = vld [vmem:[%s1 + $0x78] sm:$0xf]
  %v52 = vld [vmem:[%s1 + $0x7c] sm:$0xf]
  %v53 = vld [vmem:[%s2] sm:$0x1]
  %v55 = vperm.slane %v53, 0
  %v64 = vunpack.c.l.b16 %v14
  %v65 = vunpack.c.h.b16 %v14
  %v66 = vunpack.c.l.b16 %v15
  %v67 = vunpack.c.h.b16 %v15
  %v68 = vunpack.c.l.b16 %v16
  %v69 = vunpack.c.h.b16 %v16
  %v70 = vunpack.c.l.b16 %v17
  %v71 = vunpack.c.h.b16 %v17
  %v72 = vunpack.c.l.b16 %v18
  %v73 = vunpack.c.h.b16 %v18
  %v74 = vunpack.c.l.b16 %v19
  %v75 = vunpack.c.h.b16 %v19
  %v76 = vunpack.c.l.b16 %v20
  %v77 = vunpack.c.h.b16 %v20
  %v78 = vpack.c.b16 %v66, %v64
  %v79 = vpack.c.b16 %v67, %v65
  %v80 = vpack.c.b16 %v70, %v68
  %v81 = vpack.c.b16 %v71, %v69
  %v82 = vpack.c.b16 %v74, %v72
  %v83 = vpack.c.b16 %v75, %v73
  %v84 = vpack.c.b16 %v76, %v76
  %v85 = vpack.c.b16 %v77, %v77
  %v126 = vunpack.c.l.b16 %v21
  %v127 = vunpack.c.l.b16 %v22
  %v128 = vunpack.c.l.b16 %v23
  %v129 = vunpack.c.l.b16 %v24
  %v130 = vunpack.c.l.b16 %v25
  %v131 = vunpack.c.l.b16 %v26
  %v132 = vunpack.c.l.b16 %v27
  %v133 = vunpack.c.l.b16 %v28
  %v134 = vunpack.c.l.b16 %v29
  %v135 = vunpack.c.l.b16 %v30
  %v136 = vunpack.c.l.b16 %v31
  %v137 = vunpack.c.l.b16 %v32
  %v138 = vunpack.c.l.b16 %v33
  %v139 = vunpack.c.l.b16 %v34
  %v140 = vunpack.c.l.b16 %v35
  %v141 = vunpack.c.l.b16 %v36
  %v142 = vunpack.c.l.b16 %v37
  %v143 = vunpack.c.l.b16 %v38
  %v144 = vunpack.c.l.b16 %v39
  %v145 = vunpack.c.l.b16 %v40
  %v146 = vunpack.c.l.b16 %v41
  %v147 = vunpack.c.l.b16 %v42
  %v148 = vunpack.c.l.b16 %v43
  %v149 = vunpack.c.l.b16 %v44
  %v150 = vunpack.c.l.b16 %v45
  %v151 = vunpack.c.l.b16 %v46
  %v152 = vunpack.c.l.b16 %v47
  %v153 = vunpack.c.l.b16 %v48
  %v154 = vunpack.c.l.b16 %v49
  %v155 = vunpack.c.l.b16 %v50
  %v156 = vunpack.c.l.b16 %v51
  %v157 = vunpack.c.l.b16 %v52
  %v158 = vpack.c.b16 %v127, %v126
  %v159 = vpack.c.b16 %v129, %v128
  %v160 = vpack.c.b16 %v131, %v130
  %v161 = vpack.c.b16 %v133, %v132
  %v162 = vpack.c.b16 %v135, %v134
  %v163 = vpack.c.b16 %v137, %v136
  %v164 = vpack.c.b16 %v139, %v138
  %v165 = vpack.c.b16 %v141, %v140
  %v166 = vpack.c.b16 %v143, %v142
  %v167 = vpack.c.b16 %v145, %v144
  %v168 = vpack.c.b16 %v147, %v146
  %v169 = vpack.c.b16 %v149, %v148
  %v170 = vpack.c.b16 %v151, %v150
  %v171 = vpack.c.b16 %v153, %v152
  %v172 = vpack.c.b16 %v155, %v154
  %v173 = vpack.c.b16 %v157, %v156
  %190 = vmatpush.bf16.msra.mxu0 %v165
  %191 = vmatpush.bf16.msra.mxu0 %v164
  %192 = vmatpush.bf16.msra.mxu0 %v163
  %193 = vmatpush.bf16.msra.mxu0 %v162
  %194 = vmatpush.bf16.msra.mxu0 %v161
  %195 = vmatpush.bf16.msra.mxu0 %v160
  %196 = vmatpush.bf16.msra.mxu0 %v159
  %197 = vmatpush.bf16.msra.mxu0 %v158
  %198 = vmatmul.bf16.gmra.mxu0 %v78
  %v199 = vpop.f32.mrf.mxu0
  %v200 = vadd.f32 %v55, %v199
  %v201 = vpop.f32.mrf.mxu0
  %v202 = vadd.f32 %v55, %v201
  %203 = vmatmul.bf16.gmra.mxu0 %v80
  %v204 = vpop.f32.mrf.mxu0
  %v205 = vadd.f32 %v55, %v204
  %v206 = vpop.f32.mrf.mxu0
  %v207 = vadd.f32 %v55, %v206
  %208 = vmatmul.bf16.gmra.mxu0 %v82
  %v209 = vpop.f32.mrf.mxu0
  %v210 = vadd.f32 %v55, %v209
  %v211 = vpop.f32.mrf.mxu0
  %v212 = vadd.f32 %v55, %v211
  %213 = vmatmul.bf16.gmra.mxu0 %v84
  %v214 = vpop.f32.mrf.mxu0
  %v215 = vadd.f32 %v55, %v214
  %v216 = vpop.f32.mrf.mxu0
  %217 = vdwg.mxu0
  %218 = vmatpush.bf16.msra.mxu0 %v173
  %219 = vmatpush.bf16.msra.mxu0 %v172
  %220 = vmatpush.bf16.msra.mxu0 %v171
  %221 = vmatpush.bf16.msra.mxu0 %v170
  %222 = vmatpush.bf16.msra.mxu0 %v169
  %223 = vmatpush.bf16.msra.mxu0 %v168
  %224 = vmatpush.bf16.msra.mxu0 %v167
  %225 = vmatpush.bf16.msra.mxu0 %v166
  %226 = vmatmul.bf16.gmra.mxu0 %v79
  %v227 = vpop.f32.mrf.mxu0
  %v228 = vadd.f32 %v200, %v227
  %v229 = vpop.f32.mrf.mxu0
  %v230 = vadd.f32 %v202, %v229
  %231 = vmatmul.bf16.gmra.mxu0 %v81
  %v232 = vpop.f32.mrf.mxu0
  %v233 = vadd.f32 %v205, %v232
  %v234 = vpop.f32.mrf.mxu0
  %v235 = vadd.f32 %v207, %v234
  %236 = vmatmul.bf16.gmra.mxu0 %v83
  %v237 = vpop.f32.mrf.mxu0
  %v238 = vadd.f32 %v210, %v237
  %v239 = vpop.f32.mrf.mxu0
  %v240 = vadd.f32 %v212, %v239
  %241 = vmatmul.bf16.gmra.mxu0 %v85
  %v242 = vpop.f32.mrf.mxu0
  %v243 = vadd.f32 %v215, %v242
  %v244 = vpop.f32.mrf.mxu0
  %245 = vdwg.mxu0
  %v246 = vpack.c.bf16 %v228, %v228
  %v247 = vpack.c.bf16 %v230, %v230
  %v248 = vpack.c.bf16 %v233, %v233
  %v249 = vpack.c.bf16 %v235, %v235
  %v250 = vpack.c.bf16 %v238, %v238
  %v251 = vpack.c.bf16 %v240, %v240
  %v252 = vpack.c.bf16 %v243, %v243
  %253 = vst [vmem:[%s3] sm:$0xf] %v246
  %254 = vst [vmem:[%s3 + $0x4] sm:$0xf] %v247
  %255 = vst [vmem:[%s3 + $0x8] sm:$0xf] %v248
  %256 = vst [vmem:[%s3 + $0xc] sm:$0xf] %v249
  %257 = vst [vmem:[%s3 + $0x10] sm:$0xf] %v250
  %258 = vst [vmem:[%s3 + $0x14] sm:$0xf] %v251
  %259 = vst [vmem:[%s3 + $0x18] sm:$0xf] %v252
  // Predicated region
  $region14: #{unet_forward.7} parent=0 // pred_check
    _
  $region15: #{unet_forward.7} parent=0 // pred_check_branch
    %261 = sbr.rel (0) target = $region17
  $region16: #{unet_forward.7} parent=0 // pred_region
    _
  $region17: #{unet_forward.7} parent=0 // pred_fallthru
    _
  // Predicated region
  $region18: #{unet_forward.7} parent=0 // pred_check
    _
  $region19: #{unet_forward.7} parent=0 // pred_check_branch
    %263 = sbr.rel (0) target = $region21
  $region20: #{unet_forward.7} parent=0 // pred_region
    _
  $region21: #{unet_forward.7} parent=0 // pred_fallthru
    _

// kernel: unet_forward.8
$region0: #{unet_forward.8}
  #allocation0 [shape = 'u32[]', space=smem, size = 0x4, offset = 0x4, fixed_abs, tag = 'smem constant byte address 0x4 - core index']
  #allocation1 [shape = 'u32[72,128]{1,0:T(1,128)}', space=vmem, size = 0x9000, scoped, tag = 'internal scratch']
  %s0 = inlined_call_operand.vmem [shape: bf16[168,128], index: 0, kind: input, shape index: {}]
  %s1 = inlined_call_operand.vmem [shape: bf16[128,128], index: 1, kind: input, shape index: {}]
  %s2 = inlined_call_operand.vmem [shape: f32[1,128], index: 2, kind: input, shape index: {}]
  %s3 = inlined_call_operand.vmem [shape: bf16[168,128], index: 3, kind: output, shape index: {}]
  %s4 = sld [smem:[#allocation0]]
  $region22: #{unet_forward.8} parent=0
    _
  %s6 = ssub.s32 1, %s4
  %s7 = scalar_select 0, %s6, %s4
  // Predicated region
  $region2: #{unet_forward.8} parent=0 // pred_check
    _
  $region3: #{unet_forward.8} parent=0 // pred_check_branch
    %9 = sbr.rel (0) target = $region5
  $region4: #{unet_forward.8} parent=0 // pred_region
    _
  $region5: #{unet_forward.8} parent=0 // pred_fallthru
    _
  // Predicated region
  $region6: #{unet_forward.8} parent=0 // pred_check
    _
  $region7: #{unet_forward.8} parent=0 // pred_check_branch
    %11 = sbr.rel (0) target = $region9
  $region8: #{unet_forward.8} parent=0 // pred_region
    _
  $region9: #{unet_forward.8} parent=0 // pred_fallthru
    _
  // Predicated region
  $region10: #{unet_forward.8} parent=0 // pred_check
    _
  $region11: #{unet_forward.8} parent=0 // pred_check_branch
    %13 = sbr.rel (0) target = $region13
  $region12: #{unet_forward.8} parent=0 // pred_region
    _
  $region13: #{unet_forward.8} parent=0 // pred_fallthru
    _
  %v14 = vld [vmem:[%s0] sm:$0xf]
  %v15 = vld [vmem:[%s0 + $0x4] sm:$0xf]
  %v16 = vld [vmem:[%s0 + $0x8] sm:$0xf]
  %v17 = vld [vmem:[%s0 + $0xc] sm:$0xf]
  %v18 = vld [vmem:[%s0 + $0x10] sm:$0xf]
  %v19 = vld [vmem:[%s0 + $0x14] sm:$0xf]
  %v20 = vld [vmem:[%s0 + $0x18] sm:$0xf]
  %v21 = vld [vmem:[%s0 + $0x1c] sm:$0xf]
  %v22 = vld [vmem:[%s0 + $0x20] sm:$0xf]
  %v23 = vld [vmem:[%s0 + $0x24] sm:$0xf]
  %v24 = vld [vmem:[%s0 + $0x28] sm:$0xf]
  %v25 = vld [vmem:[%s0 + $0x2c] sm:$0xf]
  %v26 = vld [vmem:[%s0 + $0x30] sm:$0xf]
  %v27 = vld [vmem:[%s0 + $0x34] sm:$0xf]
  %v28 = vld [vmem:[%s0 + $0x38] sm:$0xf]
  %v29 = vld [vmem:[%s0 + $0x3c] sm:$0xf]
  %v30 = vld [vmem:[%s0 + $0x40] sm:$0xf]
  %v31 = vld [vmem:[%s0 + $0x44] sm:$0xf]
  %v32 = vld [vmem:[%s0 + $0x48] sm:$0xf]
  %v33 = vld [vmem:[%s0 + $0x4c] sm:$0xf]
  %v34 = vld [vmem:[%s0 + $0x50] sm:$0xf]
  %v35 = vld [vmem:[%s1] sm:$0xf]
  %v36 = vld [vmem:[%s1 + $0x4] sm:$0xf]
  %v37 = vld [vmem:[%s1 + $0x8] sm:$0xf]
  %v38 = vld [vmem:[%s1 + $0xc] sm:$0xf]
  %v39 = vld [vmem:[%s1 + $0x10] sm:$0xf]
  %v40 = vld [vmem:[%s1 + $0x14] sm:$0xf]
  %v41 = vld [vmem:[%s1 + $0x18] sm:$0xf]
  %v42 = vld [vmem:[%s1 + $0x1c] sm:$0xf]
  %v43 = vld [vmem:[%s1 + $0x20] sm:$0xf]
  %v44 = vld [vmem:[%s1 + $0x24] sm:$0xf]
  %v45 = vld [vmem:[%s1 + $0x28] sm:$0xf]
  %v46 = vld [vmem:[%s1 + $0x2c] sm:$0xf]
  %v47 = vld [vmem:[%s1 + $0x30] sm:$0xf]
  %v48 = vld [vmem:[%s1 + $0x34] sm:$0xf]
  %v49 = vld [vmem:[%s1 + $0x38] sm:$0xf]
  %v50 = vld [vmem:[%s1 + $0x3c] sm:$0xf]
  %v51 = vld [vmem:[%s2] sm:$0x1]
  %v53 = vperm.slane %v51, 0
  %v76 = vunpack.c.l.b16 %v14
  %v77 = vunpack.c.l.b16 %v15
  %v78 = vunpack.c.l.b16 %v16
  %v79 = vunpack.c.l.b16 %v17
  %v80 = vunpack.c.l.b16 %v18
  %v81 = vunpack.c.l.b16 %v19
  %v82 = vunpack.c.l.b16 %v20
  %v83 = vunpack.c.l.b16 %v21
  %v84 = vunpack.c.l.b16 %v22
  %v85 = vunpack.c.l.b16 %v23
  %v86 = vunpack.c.l.b16 %v24
  %v87 = vunpack.c.l.b16 %v25
  %v88 = vunpack.c.l.b16 %v26
  %v89 = vunpack.c.l.b16 %v27
  %v90 = vunpack.c.l.b16 %v28
  %v91 = vunpack.c.l.b16 %v29
  %v92 = vunpack.c.l.b16 %v30
  %v93 = vunpack.c.l.b16 %v31
  %v94 = vunpack.c.l.b16 %v32
  %v95 = vunpack.c.l.b16 %v33
  %v96 = vunpack.c.l.b16 %v34
  %v97 = vpack.c.b16 %v77, %v76
  %v98 = vpack.c.b16 %v79, %v78
  %v99 = vpack.c.b16 %v81, %v80
  %v100 = vpack.c.b16 %v83, %v82
  %v101 = vpack.c.b16 %v85, %v84
  %v102 = vpack.c.b16 %v87, %v86
  %v103 = vpack.c.b16 %v89, %v88
  %v104 = vpack.c.b16 %v91, %v90
  %v105 = vpack.c.b16 %v93, %v92
  %v106 = vpack.c.b16 %v95, %v94
  %v107 = vpack.c.b16 %v96, %v96
  %v135 = vunpack.c.l.b16 %v35
  %v136 = vunpack.c.l.b16 %v36
  %v137 = vunpack.c.l.b16 %v37
  %v138 = vunpack.c.l.b16 %v38
  %v139 = vunpack.c.l.b16 %v39
  %v140 = vunpack.c.l.b16 %v40
  %v141 = vunpack.c.l.b16 %v41
  %v142 = vunpack.c.l.b16 %v42
  %v143 = vunpack.c.l.b16 %v43
  %v144 = vunpack.c.l.b16 %v44
  %v145 = vunpack.c.l.b16 %v45
  %v146 = vunpack.c.l.b16 %v46
  %v147 = vunpack.c.l.b16 %v47
  %v148 = vunpack.c.l.b16 %v48
  %v149 = vunpack.c.l.b16 %v49
  %v150 = vunpack.c.l.b16 %v50
  %v151 = vpack.c.b16 %v136, %v135
  %v152 = vpack.c.b16 %v138, %v137
  %v153 = vpack.c.b16 %v140, %v139
  %v154 = vpack.c.b16 %v142, %v141
  %v155 = vpack.c.b16 %v144, %v143
  %v156 = vpack.c.b16 %v146, %v145
  %v157 = vpack.c.b16 %v148, %v147
  %v158 = vpack.c.b16 %v150, %v149
  %167 = vmatpush.bf16.msra.mxu0 %v158
  %168 = vmatpush.bf16.msra.mxu0 %v157
  %169 = vmatpush.bf16.msra.mxu0 %v156
  %170 = vmatpush.bf16.msra.mxu0 %v155
  %171 = vmatpush.bf16.msra.mxu0 %v154
  %172 = vmatpush.bf16.msra.mxu0 %v153
  %173 = vmatpush.bf16.msra.mxu0 %v152
  %174 = vmatpush.bf16.msra.mxu0 %v151
  %175 = vmatmul.bf16.gmra.mxu0 %v97
  %v176 = vpop.f32.mrf.mxu0
  %v177 = vadd.f32 %v53, %v176
  %v178 = vpop.f32.mrf.mxu0
  %v179 = vadd.f32 %v53, %v178
  %180 = vmatmul.bf16.gmra.mxu0 %v98
  %v181 = vpop.f32.mrf.mxu0
  %v182 = vadd.f32 %v53, %v181
  %v183 = vpop.f32.mrf.mxu0
  %v184 = vadd.f32 %v53, %v183
  %185 = vmatmul.bf16.gmra.mxu0 %v99
  %v186 = vpop.f32.mrf.mxu0
  %v187 = vadd.f32 %v53, %v186
  %v188 = vpop.f32.mrf.mxu0
  %v189 = vadd.f32 %v53, %v188
  %190 = vmatmul.bf16.gmra.mxu0 %v100
  %v191 = vpop.f32.mrf.mxu0
  %v192 = vadd.f32 %v53, %v191
  %v193 = vpop.f32.mrf.mxu0
  %v194 = vadd.f32 %v53, %v193
  %195 = vmatmul.bf16.gmra.mxu0 %v101
  %v196 = vpop.f32.mrf.mxu0
  %v197 = vadd.f32 %v53, %v196
  %v198 = vpop.f32.mrf.mxu0
  %v199 = vadd.f32 %v53, %v198
  %200 = vmatmul.bf16.gmra.mxu0 %v102
  %v201 = vpop.f32.mrf.mxu0
  %v202 = vadd.f32 %v53, %v201
  %v203 = vpop.f32.mrf.mxu0
  %v204 = vadd.f32 %v53, %v203
  %205 = vmatmul.bf16.gmra.mxu0 %v103
  %v206 = vpop.f32.mrf.mxu0
  %v207 = vadd.f32 %v53, %v206
  %v208 = vpop.f32.mrf.mxu0
  %v209 = vadd.f32 %v53, %v208
  %210 = vmatmul.bf16.gmra.mxu0 %v104
  %v211 = vpop.f32.mrf.mxu0
  %v212 = vadd.f32 %v53, %v211
  %v213 = vpop.f32.mrf.mxu0
  %v214 = vadd.f32 %v53, %v213
  %215 = vmatmul.bf16.gmra.mxu0 %v105
  %v216 = vpop.f32.mrf.mxu0
  %v217 = vadd.f32 %v53, %v216
  %v218 = vpop.f32.mrf.mxu0
  %v219 = vadd.f32 %v53, %v218
  %220 = vmatmul.bf16.gmra.mxu0 %v106
  %v221 = vpop.f32.mrf.mxu0
  %v222 = vadd.f32 %v53, %v221
  %v223 = vpop.f32.mrf.mxu0
  %v224 = vadd.f32 %v53, %v223
  %225 = vmatmul.bf16.gmra.mxu0 %v107
  %v226 = vpop.f32.mrf.mxu0
  %v227 = vadd.f32 %v53, %v226
  %v228 = vpop.f32.mrf.mxu0
  %229 = vdwg.mxu0
  %v230 = vpack.c.bf16 %v177, %v177
  %v231 = vpack.c.bf16 %v179, %v179
  %v232 = vpack.c.bf16 %v182, %v182
  %v233 = vpack.c.bf16 %v184, %v184
  %v234 = vpack.c.bf16 %v187, %v187
  %v235 = vpack.c.bf16 %v189, %v189
  %v236 = vpack.c.bf16 %v192, %v192
  %v237 = vpack.c.bf16 %v194, %v194
  %v238 = vpack.c.bf16 %v197, %v197
  %v239 = vpack.c.bf16 %v199, %v199
  %v240 = vpack.c.bf16 %v202, %v202
  %v241 = vpack.c.bf16 %v204, %v204
  %v242 = vpack.c.bf16 %v207, %v207
  %v243 = vpack.c.bf16 %v209, %v209
  %v244 = vpack.c.bf16 %v212, %v212
  %v245 = vpack.c.bf16 %v214, %v214
  %v246 = vpack.c.bf16 %v217, %v217
  %v247 = vpack.c.bf16 %v219, %v219
  %v248 = vpack.c.bf16 %v222, %v222
  %v249 = vpack.c.bf16 %v224, %v224
  %v250 = vpack.c.bf16 %v227, %v227
  %251 = vst [vmem:[%s3] sm:$0xf] %v230
  %252 = vst [vmem:[%s3 + $0x4] sm:$0xf] %v231
  %253 = vst [vmem:[%s3 + $0x8] sm:$0xf] %v232
  %254 = vst [vmem:[%s3 + $0xc] sm:$0xf] %v233
  %255 = vst [vmem:[%s3 + $0x10] sm:$0xf] %v234
  %256 = vst [vmem:[%s3 + $0x14] sm:$0xf] %v235
  %257 = vst [vmem:[%s3 + $0x18] sm:$0xf] %v236
  %258 = vst [vmem:[%s3 + $0x1c] sm:$0xf] %v237
  %259 = vst [vmem:[%s3 + $0x20] sm:$0xf] %v238
  %260 = vst [vmem:[%s3 + $0x24] sm:$0xf] %v239
  %261 = vst [vmem:[%s3 + $0x28] sm:$0xf] %v240
  %262 = vst [vmem:[%s3 + $0x2c] sm:$0xf] %v241
  %263 = vst [vmem:[%s3 + $0x30] sm:$0xf] %v242
  %264 = vst [vmem:[%s3 + $0x34] sm:$0xf] %v243
  %265 = vst [vmem:[%s3 + $0x38] sm:$0xf] %v244
  %266 = vst [vmem:[%s3 + $0x3c] sm:$0xf] %v245
  %267 = vst [vmem:[%s3 + $0x40] sm:$0xf] %v246
  %268 = vst [vmem:[%s3 + $0x44] sm:$0xf] %v247
  %269 = vst [vmem:[%s3 + $0x48] sm:$0xf] %v248
  %270 = vst [vmem:[%s3 + $0x4c] sm:$0xf] %v249
  %271 = vst [vmem:[%s3 + $0x50] sm:$0xf] %v250
  // Predicated region
  $region14: #{unet_forward.8} parent=0 // pred_check
    _
  $region15: #{unet_forward.8} parent=0 // pred_check_branch
    %273 = sbr.rel (0) target = $region17
  $region16: #{unet_forward.8} parent=0 // pred_region
    _
  $region17: #{unet_forward.8} parent=0 // pred_fallthru
    _
  // Predicated region
  $region18: #{unet_forward.8} parent=0 // pred_check
    _
  $region19: #{unet_forward.8} parent=0 // pred_check_branch
    %275 = sbr.rel (0) target = $region21
  $region20: #{unet_forward.8} parent=0 // pred_region
    _
  $region21: #{unet_forward.8} parent=0 // pred_fallthru
    _

// kernel: tile.6
$region0: #{tile.6}
  #allocation0 [shape = 's32[1]{0}', space=sflag, size = 0x4, scoped, tag = 'scoped memory for tile.6']
  %s0 = inlined_call_operand.vmem [shape: f32[2], index: 0, kind: input, shape index: {}]
  %s1 = inlined_call_operand.vmem [shape: f32[4,2], index: 1, kind: output, shape index: {}]
  // Predicated region
  $region2: #{tile.6} parent=0 // pred_check
    _
  $region3: #{tile.6} parent=0 // pred_check_branch
    %3 = sbr.rel (0) target = $region5
  $region4: #{tile.6} parent=0 // pred_region
    _
  $region5: #{tile.6} parent=0 // pred_fallthru
    _
  %v4 = vld [vmem:[%s0] ss:$0 sm:$0xff]
  %5 = vst [vmem:[%s1] sm:$0xf] %v4

// kernel: tile.7
$region0: #{tile.7}
  %s0 = inlined_call_operand.vmem [shape: f32[4,2], index: 0, kind: input, shape index: {}]
  %s1 = inlined_call_operand.vmem [shape: f32[8], index: 1, kind: output, shape index: {}]
  $region1: #{tile.7} parent=0
    #allocation0 [shape = 'u8[4096]{0}', space=vmem, size = 0x1000, scoped, tag = 'scoped mem for output reshape']
    #allocation1 [shape = 'u8[4096]{0}', space=vmem, size = 0x1000, scoped, tag = 'scoped mem for input reshape']
    %s3 = ssub.s32 16, 1
    %v4 = vld [vmem:[%s0] sm:%s3]
    %5 = vst [vmem:[#allocation1] sm:%s3] %v4
    %v6 = vld [vmem:[#allocation1] sm:$0x1]
    %vm7 = vcmask 15360
    %8 = vst.msk [vmem:[#allocation0] sm:$0x1] %vm7, %v6
    %s9 = scalar_lea.vmem [#allocation1], 3
    %v10 = vld [vmem:[%s9] sm:$0x1]
    %11 = vrot.lane.b32.xlu0 %v10, 6
    %v12 = vpop.permute.xlu0 %11
    %vm13 = vcmask 64560
    %14 = vst.msk [vmem:[#allocation0] sm:$0x1] %vm13, %v12
    %s15 = scalar_lea.vmem [#allocation1], 2
    %v16 = vld [vmem:[%s15] sm:$0x1]
    %17 = vrot.lane.b32.xlu0 %v16, 4
    %v18 = vpop.permute.xlu0 %17
    %vm19 = vcmask 48160
    %20 = vst.msk [vmem:[#allocation0] sm:$0x1] %vm19, %v18
    %s21 = scalar_lea.vmem [#allocation1], 1
    %v22 = vld [vmem:[%s21] sm:$0x1]
    %23 = vrot.lane.b32.xlu0 %v22, 2
    %v24 = vpop.permute.xlu0 %23
    %vm25 = vcmask 31760
    %26 = vst.msk [vmem:[#allocation0] sm:$0x1] %vm25, %v24
    %s28 = ssub.s32 2, 1
    %v29 = vld [vmem:[#allocation0] sm:%s28]
    %s31 = ssub.s32 2, 1
    %32 = vst [vmem:[%s1] sm:%s31] %v29

// kernel: unet_forward.9
$region0: #{unet_forward.9}
  #allocation0 [shape = 'u32[]', space=smem, size = 0x4, offset = 0x4, fixed_abs, tag = 'smem constant byte address 0x4 - core index']
  #allocation1 [shape = 'u32[72,128]{1,0:T(1,128)}', space=vmem, size = 0x9000, scoped, tag = 'internal scratch']
  %s0 = inlined_call_operand.vmem [shape: bf16[1024,128], index: 0, kind: input, shape index: {}]
  %s1 = inlined_call_operand.vmem [shape: bf16[128,128], index: 1, kind: input, shape index: {}]
  %s2 = inlined_call_operand.vmem [shape: f32[1,128], index: 2, kind: input, shape index: {}]
  %s3 = inlined_call_operand.vmem [shape: f32[1024,128], index: 3, kind: output, shape index: {}]
  %s4 = sld [smem:[#allocation0]]
  $region45: #{unet_forward.9} parent=0
    _
  %s6 = ssub.s32 1, %s4
  %s7 = scalar_select 0, %s6, %s4
  loop: start=0, step=1, limit=4
  $region2: #{unet_forward.9} parent=0 // loop_pre_header
    _
  $region3: #{unet_forward.9} parent=0 // loop_header
    %s9 = sphi 0, %s13
    %p10 = scmp.ge.s32.totalorder %s9, 4
    %s19 = sphi 0, %s21
    %s22 = sphi 0, %s19
    %s23 = sphi 0, %s22
    %s39 = sphi 0, %s23
    %s43 = sphi 0, %s43
    %s45 = sphi 0, %s43
    %s46 = sphi 0, %s45
    %s60 = sphi 0, %s46
    %s64 = sphi 0, %s64
    %s66 = sphi 0, %s64
    %s67 = sphi 0, %s66
    %s81 = sphi 0, %s67
    %s87 = sphi 0, %s89
    %s90 = sphi 0, %s87
    %s91 = sphi 0, %s90
    %s107 = sphi 0, %s91
  $region4: #{unet_forward.9} parent=0 // loop_header_branch
    %12 = sbr.rel (%p10) target = $region8
  $region5: #{unet_forward.9} parent=0 // loop_body
    %s14 = ssub.s32 %s9, 1
    %s15 = ssub.s32 %s9, 2
    %s16 = sadd.s32 %s9, 1
    %s17 = ssub.s32 %s9, %s16
    %p18 = scmp.eq.s32.totalorder %s17, 0
    %s20 = sadd.s32 %s19, 1
    %s21 = scalar_select %p18, %s19, %s20
    %p24 = pneg %p18
    %p25 = scmp.eq.s32.totalorder %s9, 1
    %p26 = por %p24, %p25
    %p27 = scmp.ne.s32.totalorder %s19, %s22
    %p28 = scmp.eq.s32.totalorder %s9, 0
    %p29 = por %p27, %p28
    %p30 = scmp.ne.s32.totalorder %s19, %s22
    %p31 = scmp.eq.s32.totalorder %s14, 1
    %p32 = por %p30, %p31
    %p33 = scmp.ne.s32.totalorder %s22, %s23
    %p34 = scmp.eq.s32.totalorder %s14, 0
    %p35 = por %p33, %p34
    %p36 = scmp.ne.s32.totalorder %s22, %s23
    %p37 = scmp.eq.s32.totalorder %s15, 1
    %p38 = por %p36, %p37
    %p40 = scmp.ne.s32.totalorder %s23, %s39
    %p41 = scmp.eq.s32.totalorder %s15, 0
    %p42 = por %p40, %p41
    %s44 = sadd.s32 %s43, 1
    %p47 = scmp.eq.s32.totalorder %s9, 1
    %p48 = scmp.ne.s32.totalorder %s43, %s45
    %p49 = scmp.eq.s32.totalorder %s9, 0
    %p50 = por %p48, %p49
    %p51 = scmp.ne.s32.totalorder %s43, %s45
    %p52 = scmp.eq.s32.totalorder %s14, 1
    %p53 = por %p51, %p52
    %p54 = scmp.ne.s32.totalorder %s45, %s46
    %p55 = scmp.eq.s32.totalorder %s14, 0
    %p56 = por %p54, %p55
    %p57 = scmp.ne.s32.totalorder %s45, %s46
    %p58 = scmp.eq.s32.totalorder %s15, 1
    %p59 = por %p57, %p58
    %p61 = scmp.ne.s32.totalorder %s46, %s60
    %p62 = scmp.eq.s32.totalorder %s15, 0
    %p63 = por %p61, %p62
    %s65 = sadd.s32 %s64, 1
    %p68 = scmp.eq.s32.totalorder %s9, 1
    %p69 = scmp.ne.s32.totalorder %s64, %s66
    %p70 = scmp.eq.s32.totalorder %s9, 0
    %p71 = por %p69, %p70
    %p72 = scmp.ne.s32.totalorder %s64, %s66
    %p73 = scmp.eq.s32.totalorder %s14, 1
    %p74 = por %p72, %p73
    %p75 = scmp.ne.s32.totalorder %s66, %s67
    %p76 = scmp.eq.s32.totalorder %s14, 0
    %p77 = por %p75, %p76
    %p78 = scmp.ne.s32.totalorder %s66, %s67
    %p79 = scmp.eq.s32.totalorder %s15, 1
    %p80 = por %p78, %p79
    %p82 = scmp.ne.s32.totalorder %s67, %s81
    %p83 = scmp.eq.s32.totalorder %s15, 0
    %p84 = por %p82, %p83
    %s85 = ssub.s32 %s9, %s16
    %p86 = scmp.eq.s32.totalorder %s85, 0
    %s88 = sadd.s32 %s87, 1
    %s89 = scalar_select %p86, %s87, %s88
    %p92 = pneg %p86
    %p93 = scmp.eq.s32.totalorder %s9, 1
    %p94 = por %p92, %p93
    %p95 = scmp.ne.s32.totalorder %s87, %s90
    %p96 = scmp.eq.s32.totalorder %s9, 0
    %p97 = por %p95, %p96
    %p98 = scmp.ne.s32.totalorder %s87, %s90
    %p99 = scmp.eq.s32.totalorder %s14, 1
    %p100 = por %p98, %p99
    %p101 = scmp.ne.s32.totalorder %s90, %s91
    %p102 = scmp.eq.s32.totalorder %s14, 0
    %p103 = por %p101, %p102
    %p104 = scmp.ne.s32.totalorder %s90, %s91
    %p105 = scmp.eq.s32.totalorder %s15, 1
    %p106 = por %p104, %p105
    %p108 = scmp.ne.s32.totalorder %s91, %s107
    %p109 = scmp.eq.s32.totalorder %s15, 0
    %p110 = por %p108, %p109
    %p111 = scmp.le.s32.totalorder 1, %s9
    %p112 = scmp.lt.s32.totalorder %s9, 3
    %p113 = pnand %p111, %p112
    %p114 = pneg %p113
    // Predicated region
    $region9: #{unet_forward.9} parent=5 // pred_check
      _
    $region10: #{unet_forward.9} parent=5 // pred_check_branch
      %116 = sbr.rel (%p113) target = $region12
    $region11: #{unet_forward.9} parent=5 // pred_region
      %s117 = ssub.s32 %s9, 1
      // Predicated region
      $region13: #{unet_forward.9} parent=11 // pred_check
        %p118 = pneg %p56
      $region14: #{unet_forward.9} parent=11 // pred_check_branch
        %120 = sbr.rel (%p118) target = $region16
      $region15: #{unet_forward.9} parent=11 // pred_region
        _
      $region16: #{unet_forward.9} parent=11 // pred_fallthru
        _
      // Predicated region
      $region17: #{unet_forward.9} parent=11 // pred_check
        %p121 = pneg %p77
      $region18: #{unet_forward.9} parent=11 // pred_check_branch
        %123 = sbr.rel (%p121) target = $region20
      $region19: #{unet_forward.9} parent=11 // pred_region
        _
      $region20: #{unet_forward.9} parent=11 // pred_fallthru
        _
    $region12: #{unet_forward.9} parent=5 // pred_fallthru
      _
    %p124 = scmp.lt.s32.totalorder %s9, 2
    // Predicated region
    $region21: #{unet_forward.9} parent=5 // pred_check
      %p125 = pneg %p124
    $region22: #{unet_forward.9} parent=5 // pred_check_branch
      %127 = sbr.rel (%p125) target = $region24
    $region23: #{unet_forward.9} parent=5 // pred_region
      // Predicated region
      $region25: #{unet_forward.9} parent=23 // pred_check
        %p128 = pneg %p29
      $region26: #{unet_forward.9} parent=23 // pred_check_branch
        %130 = sbr.rel (%p128) target = $region28
      $region27: #{unet_forward.9} parent=23 // pred_region
        %s131 = smul.u32 64, %s9
        %p132 = scmp.lt.s32.totalorder %s131, 127
        %s133 = scalar_select %p132, %s131, 127
        %s134 = smul.addr %s133, 4
        %s135 = scalar_lea.vmem %s0, %s134
        %s136 = smul.u32 64, %s9
      $region28: #{unet_forward.9} parent=23 // pred_fallthru
        _
    $region24: #{unet_forward.9} parent=5 // pred_fallthru
      _
    %p137 = scmp.le.s32.totalorder 1, %s9
    %p138 = scmp.lt.s32.totalorder %s9, 3
    %p139 = pnand %p137, %p138
    %p140 = pneg %p139
    // Predicated region
    $region29: #{unet_forward.9} parent=5 // pred_check
      _
    $region30: #{unet_forward.9} parent=5 // pred_check_branch
      %142 = sbr.rel (%p139) target = $region32
    $region31: #{unet_forward.9} parent=5 // pred_region
      %s143 = ssub.s32 %s9, 1
      %s144 = smul.u32 64, %s14
      %p145 = scmp.lt.s32.totalorder %s144, 127
      %s146 = scalar_select %p145, %s144, 127
      %s147 = smul.addr %s146, 4
      %s148 = scalar_lea.vmem %s0, %s147
      %p149 = pneg %p35
      %p150 = pneg %p32
      %p151 = pneg %p56
      %p152 = pneg %p53
      %p153 = pneg %p77
      %p154 = pneg %p74
      %p155 = pneg %p103
      %p156 = pneg %p100
      %s157 = smul.u32 64, %s14
      %p158 = scmp.lt.s32.totalorder %s157, 127
      %s159 = scalar_select %p158, %s157, 127
      %s160 = smul.addr %s159, 8
      %s161 = scalar_lea.vmem %s3, %s160
      %s162 = smul.u32 64, %s14
      %p163 = scmp.lt.s32.totalorder %s162, 127
      %s164 = scalar_select %p163, %s162, 127
      %s165 = smul.addr %s164, 4
      %s166 = scalar_lea.vmem %s0, %s165
      %s167 = smul.u32 64, %s14
      %s168 = smul.u32 64, %s14
      %p169 = scmp.lt.s32.totalorder %s168, 127
      %s170 = scalar_select %p169, %s168, 127
      %s171 = smul.addr %s170, 8
      %s172 = scalar_lea.vmem %s3, %s171
      %s173 = smul.u32 64, %s14
      %v174 = vld [vmem:[%s166] sm:$0xf]
      %v175 = vld [vmem:[%s166 + $0x4] sm:$0xf]
      %v176 = vld [vmem:[%s166 + $0x8] sm:$0xf]
      %v177 = vld [vmem:[%s166 + $0xc] sm:$0xf]
      %v178 = vld [vmem:[%s166 + $0x10] sm:$0xf]
      %v179 = vld [vmem:[%s166 + $0x14] sm:$0xf]
      %v180 = vld [vmem:[%s166 + $0x18] sm:$0xf]
      %v181 = vld [vmem:[%s166 + $0x1c] sm:$0xf]
      %v182 = vld [vmem:[%s166 + $0x20] sm:$0xf]
      %v183 = vld [vmem:[%s166 + $0x24] sm:$0xf]
      %v184 = vld [vmem:[%s166 + $0x28] sm:$0xf]
      %v185 = vld [vmem:[%s166 + $0x2c] sm:$0xf]
      %v186 = vld [vmem:[%s166 + $0x30] sm:$0xf]
      %v187 = vld [vmem:[%s166 + $0x34] sm:$0xf]
      %v188 = vld [vmem:[%s166 + $0x38] sm:$0xf]
      %v189 = vld [vmem:[%s166 + $0x3c] sm:$0xf]
      %v190 = vld [vmem:[%s166 + $0x40] sm:$0xf]
      %v191 = vld [vmem:[%s166 + $0x44] sm:$0xf]
      %v192 = vld [vmem:[%s166 + $0x48] sm:$0xf]
      %v193 = vld [vmem:[%s166 + $0x4c] sm:$0xf]
      %v194 = vld [vmem:[%s166 + $0x50] sm:$0xf]
      %v195 = vld [vmem:[%s166 + $0x54] sm:$0xf]
      %v196 = vld [vmem:[%s166 + $0x58] sm:$0xf]
      %v197 = vld [vmem:[%s166 + $0x5c] sm:$0xf]
      %v198 = vld [vmem:[%s166 + $0x60] sm:$0xf]
      %v199 = vld [vmem:[%s166 + $0x64] sm:$0xf]
      %v200 = vld [vmem:[%s166 + $0x68] sm:$0xf]
      %v201 = vld [vmem:[%s166 + $0x6c] sm:$0xf]
      %v202 = vld [vmem:[%s166 + $0x70] sm:$0xf]
      %v203 = vld [vmem:[%s166 + $0x74] sm:$0xf]
      %v204 = vld [vmem:[%s166 + $0x78] sm:$0xf]
      %v205 = vld [vmem:[%s166 + $0x7c] sm:$0xf]
      %v206 = vld [vmem:[%s166 + $0x80] sm:$0xf]
      %v207 = vld [vmem:[%s166 + $0x84] sm:$0xf]
      %v208 = vld [vmem:[%s166 + $0x88] sm:$0xf]
      %v209 = vld [vmem:[%s166 + $0x8c] sm:$0xf]
      %v210 = vld [vmem:[%s166 + $0x90] sm:$0xf]
      %v211 = vld [vmem:[%s166 + $0x94] sm:$0xf]
      %v212 = vld [vmem:[%s166 + $0x98] sm:$0xf]
      %v213 = vld [vmem:[%s166 + $0x9c] sm:$0xf]
      %v214 = vld [vmem:[%s166 + $0xa0] sm:$0xf]
      %v215 = vld [vmem:[%s166 + $0xa4] sm:$0xf]
      %v216 = vld [vmem:[%s166 + $0xa8] sm:$0xf]
      %v217 = vld [vmem:[%s166 + $0xac] sm:$0xf]
      %v218 = vld [vmem:[%s166 + $0xb0] sm:$0xf]
      %v219 = vld [vmem:[%s166 + $0xb4] sm:$0xf]
      %v220 = vld [vmem:[%s166 + $0xb8] sm:$0xf]
      %v221 = vld [vmem:[%s166 + $0xbc] sm:$0xf]
      %v222 = vld [vmem:[%s166 + $0xc0] sm:$0xf]
      %v223 = vld [vmem:[%s166 + $0xc4] sm:$0xf]
      %v224 = vld [vmem:[%s166 + $0xc8] sm:$0xf]
      %v225 = vld [vmem:[%s166 + $0xcc] sm:$0xf]
      %v226 = vld [vmem:[%s166 + $0xd0] sm:$0xf]
      %v227 = vld [vmem:[%s166 + $0xd4] sm:$0xf]
      %v228 = vld [vmem:[%s166 + $0xd8] sm:$0xf]
      %v229 = vld [vmem:[%s166 + $0xdc] sm:$0xf]
      %v230 = vld [vmem:[%s166 + $0xe0] sm:$0xf]
      %v231 = vld [vmem:[%s166 + $0xe4] sm:$0xf]
      %v232 = vld [vmem:[%s166 + $0xe8] sm:$0xf]
      %v233 = vld [vmem:[%s166 + $0xec] sm:$0xf]
      %v234 = vld [vmem:[%s166 + $0xf0] sm:$0xf]
      %v235 = vld [vmem:[%s166 + $0xf4] sm:$0xf]
      %v236 = vld [vmem:[%s166 + $0xf8] sm:$0xf]
      %v237 = vld [vmem:[%s166 + $0xfc] sm:$0xf]
      %v238 = vld [vmem:[%s1] sm:$0xf]
      %v239 = vld [vmem:[%s1 + $0x4] sm:$0xf]
      %v240 = vld [vmem:[%s1 + $0x8] sm:$0xf]
      %v241 = vld [vmem:[%s1 + $0xc] sm:$0xf]
      %v242 = vld [vmem:[%s1 + $0x10] sm:$0xf]
      %v243 = vld [vmem:[%s1 + $0x14] sm:$0xf]
      %v244 = vld [vmem:[%s1 + $0x18] sm:$0xf]
      %v245 = vld [vmem:[%s1 + $0x1c] sm:$0xf]
      %v246 = vld [vmem:[%s1 + $0x20] sm:$0xf]
      %v247 = vld [vmem:[%s1 + $0x24] sm:$0xf]
      %v248 = vld [vmem:[%s1 + $0x28] sm:$0xf]
      %v249 = vld [vmem:[%s1 + $0x2c] sm:$0xf]
      %v250 = vld [vmem:[%s1 + $0x30] sm:$0xf]
      %v251 = vld [vmem:[%s1 + $0x34] sm:$0xf]
      %v252 = vld [vmem:[%s1 + $0x38] sm:$0xf]
      %v253 = vld [vmem:[%s1 + $0x3c] sm:$0xf]
      %v254 = vld [vmem:[%s2] sm:$0x1]
      %v256 = vperm.slane %v254, 0
      %v322 = vunpack.c.l.b16 %v174
      %v323 = vunpack.c.l.b16 %v175
      %v324 = vunpack.c.l.b16 %v176
      %v325 = vunpack.c.l.b16 %v177
      %v326 = vunpack.c.l.b16 %v178
      %v327 = vunpack.c.l.b16 %v179
      %v328 = vunpack.c.l.b16 %v180
      %v329 = vunpack.c.l.b16 %v181
      %v330 = vunpack.c.l.b16 %v182
      %v331 = vunpack.c.l.b16 %v183
      %v332 = vunpack.c.l.b16 %v184
      %v333 = vunpack.c.l.b16 %v185
      %v334 = vunpack.c.l.b16 %v186
      %v335 = vunpack.c.l.b16 %v187
      %v336 = vunpack.c.l.b16 %v188
      %v337 = vunpack.c.l.b16 %v189
      %v338 = vunpack.c.l.b16 %v190
      %v339 = vunpack.c.l.b16 %v191
      %v340 = vunpack.c.l.b16 %v192
      %v341 = vunpack.c.l.b16 %v193
      %v342 = vunpack.c.l.b16 %v194
      %v343 = vunpack.c.l.b16 %v195
      %v344 = vunpack.c.l.b16 %v196
      %v345 = vunpack.c.l.b16 %v197
      %v346 = vunpack.c.l.b16 %v198
      %v347 = vunpack.c.l.b16 %v199
      %v348 = vunpack.c.l.b16 %v200
      %v349 = vunpack.c.l.b16 %v201
      %v350 = vunpack.c.l.b16 %v202
      %v351 = vunpack.c.l.b16 %v203
      %v352 = vunpack.c.l.b16 %v204
      %v353 = vunpack.c.l.b16 %v205
      %v354 = vunpack.c.l.b16 %v206
      %v355 = vunpack.c.l.b16 %v207
      %v356 = vunpack.c.l.b16 %v208
      %v357 = vunpack.c.l.b16 %v209
      %v358 = vunpack.c.l.b16 %v210
      %v359 = vunpack.c.l.b16 %v211
      %v360 = vunpack.c.l.b16 %v212
      %v361 = vunpack.c.l.b16 %v213
      %v362 = vunpack.c.l.b16 %v214
      %v363 = vunpack.c.l.b16 %v215
      %v364 = vunpack.c.l.b16 %v216
      %v365 = vunpack.c.l.b16 %v217
      %v366 = vunpack.c.l.b16 %v218
      %v367 = vunpack.c.l.b16 %v219
      %v368 = vunpack.c.l.b16 %v220
      %v369 = vunpack.c.l.b16 %v221
      %v370 = vunpack.c.l.b16 %v222
      %v371 = vunpack.c.l.b16 %v223
      %v372 = vunpack.c.l.b16 %v224
      %v373 = vunpack.c.l.b16 %v225
      %v374 = vunpack.c.l.b16 %v226
      %v375 = vunpack.c.l.b16 %v227
      %v376 = vunpack.c.l.b16 %v228
      %v377 = vunpack.c.l.b16 %v229
      %v378 = vunpack.c.l.b16 %v230
      %v379 = vunpack.c.l.b16 %v231
      %v380 = vunpack.c.l.b16 %v232
      %v381 = vunpack.c.l.b16 %v233
      %v382 = vunpack.c.l.b16 %v234
      %v383 = vunpack.c.l.b16 %v235
      %v384 = vunpack.c.l.b16 %v236
      %v385 = vunpack.c.l.b16 %v237
      %v386 = vpack.c.b16 %v323, %v322
      %v387 = vpack.c.b16 %v325, %v324
      %v388 = vpack.c.b16 %v327, %v326
      %v389 = vpack.c.b16 %v329, %v328
      %v390 = vpack.c.b16 %v331, %v330
      %v391 = vpack.c.b16 %v333, %v332
      %v392 = vpack.c.b16 %v335, %v334
      %v393 = vpack.c.b16 %v337, %v336
      %v394 = vpack.c.b16 %v339, %v338
      %v395 = vpack.c.b16 %v341, %v340
      %v396 = vpack.c.b16 %v343, %v342
      %v397 = vpack.c.b16 %v345, %v344
      %v398 = vpack.c.b16 %v347, %v346
      %v399 = vpack.c.b16 %v349, %v348
      %v400 = vpack.c.b16 %v351, %v350
      %v401 = vpack.c.b16 %v353, %v352
      %v402 = vpack.c.b16 %v355, %v354
      %v403 = vpack.c.b16 %v357, %v356
      %v404 = vpack.c.b16 %v359, %v358
      %v405 = vpack.c.b16 %v361, %v360
      %v406 = vpack.c.b16 %v363, %v362
      %v407 = vpack.c.b16 %v365, %v364
      %v408 = vpack.c.b16 %v367, %v366
      %v409 = vpack.c.b16 %v369, %v368
      %v410 = vpack.c.b16 %v371, %v370
      %v411 = vpack.c.b16 %v373, %v372
      %v412 = vpack.c.b16 %v375, %v374
      %v413 = vpack.c.b16 %v377, %v376
      %v414 = vpack.c.b16 %v379, %v378
      %v415 = vpack.c.b16 %v381, %v380
      %v416 = vpack.c.b16 %v383, %v382
      %v417 = vpack.c.b16 %v385, %v384
      %v466 = vunpack.c.l.b16 %v238
      %v467 = vunpack.c.l.b16 %v239
      %v468 = vunpack.c.l.b16 %v240
      %v469 = vunpack.c.l.b16 %v241
      %v470 = vunpack.c.l.b16 %v242
      %v471 = vunpack.c.l.b16 %v243
      %v472 = vunpack.c.l.b16 %v244
      %v473 = vunpack.c.l.b16 %v245
      %v474 = vunpack.c.l.b16 %v246
      %v475 = vunpack.c.l.b16 %v247
      %v476 = vunpack.c.l.b16 %v248
      %v477 = vunpack.c.l.b16 %v249
      %v478 = vunpack.c.l.b16 %v250
      %v479 = vunpack.c.l.b16 %v251
      %v480 = vunpack.c.l.b16 %v252
      %v481 = vunpack.c.l.b16 %v253
      %v482 = vpack.c.b16 %v467, %v466
      %v483 = vpack.c.b16 %v469, %v468
      %v484 = vpack.c.b16 %v471, %v470
      %v485 = vpack.c.b16 %v473, %v472
      %v486 = vpack.c.b16 %v475, %v474
      %v487 = vpack.c.b16 %v477, %v476
      %v488 = vpack.c.b16 %v479, %v478
      %v489 = vpack.c.b16 %v481, %v480
      %498 = vmatpush.bf16.msra.mxu0 %v489
      %499 = vmatpush.bf16.msra.mxu0 %v488
      %500 = vmatpush.bf16.msra.mxu0 %v487
      %501 = vmatpush.bf16.msra.mxu0 %v486
      %502 = vmatpush.bf16.msra.mxu0 %v485
      %503 = vmatpush.bf16.msra.mxu0 %v484
      %504 = vmatpush.bf16.msra.mxu0 %v483
      %505 = vmatpush.bf16.msra.mxu0 %v482
      %506 = vmatmul.bf16.gmra.mxu0 %v386
      %v507 = vpop.f32.mrf.mxu0
      %v508 = vadd.f32 %v256, %v507
      %v509 = vpop.f32.mrf.mxu0
      %v510 = vadd.f32 %v256, %v509
      %511 = vmatmul.bf16.gmra.mxu0 %v387
      %v512 = vpop.f32.mrf.mxu0
      %v513 = vadd.f32 %v256, %v512
      %v514 = vpop.f32.mrf.mxu0
      %v515 = vadd.f32 %v256, %v514
      %516 = vmatmul.bf16.gmra.mxu0 %v388
      %v517 = vpop.f32.mrf.mxu0
      %v518 = vadd.f32 %v256, %v517
      %v519 = vpop.f32.mrf.mxu0
      %v520 = vadd.f32 %v256, %v519
      %521 = vmatmul.bf16.gmra.mxu0 %v389
      %v522 = vpop.f32.mrf.mxu0
      %v523 = vadd.f32 %v256, %v522
      %v524 = vpop.f32.mrf.mxu0
      %v525 = vadd.f32 %v256, %v524
      %526 = vmatmul.bf16.gmra.mxu0 %v390
      %v527 = vpop.f32.mrf.mxu0
      %v528 = vadd.f32 %v256, %v527
      %v529 = vpop.f32.mrf.mxu0
      %v530 = vadd.f32 %v256, %v529
      %531 = vmatmul.bf16.gmra.mxu0 %v391
      %v532 = vpop.f32.mrf.mxu0
      %v533 = vadd.f32 %v256, %v532
      %v534 = vpop.f32.mrf.mxu0
      %v535 = vadd.f32 %v256, %v534
      %536 = vmatmul.bf16.gmra.mxu0 %v392
      %v537 = vpop.f32.mrf.mxu0
      %v538 = vadd.f32 %v256, %v537
      %v539 = vpop.f32.mrf.mxu0
      %v540 = vadd.f32 %v256, %v539
      %541 = vmatmul.bf16.gmra.mxu0 %v393
      %v542 = vpop.f32.mrf.mxu0
      %v543 = vadd.f32 %v256, %v542
      %v544 = vpop.f32.mrf.mxu0
      %v545 = vadd.f32 %v256, %v544
      %546 = vmatmul.bf16.gmra.mxu0 %v394
      %v547 = vpop.f32.mrf.mxu0
      %v548 = vadd.f32 %v256, %v547
      %v549 = vpop.f32.mrf.mxu0
      %v550 = vadd.f32 %v256, %v549
      %551 = vmatmul.bf16.gmra.mxu0 %v395
      %v552 = vpop.f32.mrf.mxu0
      %v553 = vadd.f32 %v256, %v552
      %v554 = vpop.f32.mrf.mxu0
      %v555 = vadd.f32 %v256, %v554
      %556 = vmatmul.bf16.gmra.mxu0 %v396
      %v557 = vpop.f32.mrf.mxu0
      %v558 = vadd.f32 %v256, %v557
      %v559 = vpop.f32.mrf.mxu0
      %v560 = vadd.f32 %v256, %v559
      %561 = vmatmul.bf16.gmra.mxu0 %v397
      %v562 = vpop.f32.mrf.mxu0
      %v563 = vadd.f32 %v256, %v562
      %v564 = vpop.f32.mrf.mxu0
      %v565 = vadd.f32 %v256, %v564
      %566 = vmatmul.bf16.gmra.mxu0 %v398
      %v567 = vpop.f32.mrf.mxu0
      %v568 = vadd.f32 %v256, %v567
      %v569 = vpop.f32.mrf.mxu0
      %v570 = vadd.f32 %v256, %v569
      %571 = vmatmul.bf16.gmra.mxu0 %v399
      %v572 = vpop.f32.mrf.mxu0
      %v573 = vadd.f32 %v256, %v572
      %v574 = vpop.f32.mrf.mxu0
      %v575 = vadd.f32 %v256, %v574
      %576 = vmatmul.bf16.gmra.mxu0 %v400
      %v577 = vpop.f32.mrf.mxu0
      %v578 = vadd.f32 %v256, %v577
      %v579 = vpop.f32.mrf.mxu0
      %v580 = vadd.f32 %v256, %v579
      %581 = vmatmul.bf16.gmra.mxu0 %v401
      %v582 = vpop.f32.mrf.mxu0
      %v583 = vadd.f32 %v256, %v582
      %v584 = vpop.f32.mrf.mxu0
      %v585 = vadd.f32 %v256, %v584
      %586 = vmatmul.bf16.gmra.mxu0 %v402
      %v587 = vpop.f32.mrf.mxu0
      %v588 = vadd.f32 %v256, %v587
      %v589 = vpop.f32.mrf.mxu0
      %v590 = vadd.f32 %v256, %v589
      %591 = vmatmul.bf16.gmra.mxu0 %v403
      %v592 = vpop.f32.mrf.mxu0
      %v593 = vadd.f32 %v256, %v592
      %v594 = vpop.f32.mrf.mxu0
      %v595 = vadd.f32 %v256, %v594
      %596 = vmatmul.bf16.gmra.mxu0 %v404
      %v597 = vpop.f32.mrf.mxu0
      %v598 = vadd.f32 %v256, %v597
      %v599 = vpop.f32.mrf.mxu0
      %v600 = vadd.f32 %v256, %v599
      %601 = vmatmul.bf16.gmra.mxu0 %v405
      %v602 = vpop.f32.mrf.mxu0
      %v603 = vadd.f32 %v256, %v602
      %v604 = vpop.f32.mrf.mxu0
      %v605 = vadd.f32 %v256, %v604
      %606 = vmatmul.bf16.gmra.mxu0 %v406
      %v607 = vpop.f32.mrf.mxu0
      %v608 = vadd.f32 %v256, %v607
      %v609 = vpop.f32.mrf.mxu0
      %v610 = vadd.f32 %v256, %v609
      %611 = vmatmul.bf16.gmra.mxu0 %v407
      %v612 = vpop.f32.mrf.mxu0
      %v613 = vadd.f32 %v256, %v612
      %v614 = vpop.f32.mrf.mxu0
      %v615 = vadd.f32 %v256, %v614
      %616 = vmatmul.bf16.gmra.mxu0 %v408
      %v617 = vpop.f32.mrf.mxu0
      %v618 = vadd.f32 %v256, %v617
      %v619 = vpop.f32.mrf.mxu0
      %v620 = vadd.f32 %v256, %v619
      %621 = vmatmul.bf16.gmra.mxu0 %v409
      %v622 = vpop.f32.mrf.mxu0
      %v623 = vadd.f32 %v256, %v622
      %v624 = vpop.f32.mrf.mxu0
      %v625 = vadd.f32 %v256, %v624
      %626 = vmatmul.bf16.gmra.mxu0 %v410
      %v627 = vpop.f32.mrf.mxu0
      %v628 = vadd.f32 %v256, %v627
      %v629 = vpop.f32.mrf.mxu0
      %v630 = vadd.f32 %v256, %v629
      %631 = vmatmul.bf16.gmra.mxu0 %v411
      %v632 = vpop.f32.mrf.mxu0
      %v633 = vadd.f32 %v256, %v632
      %v634 = vpop.f32.mrf.mxu0
      %v635 = vadd.f32 %v256, %v634
      %636 = vmatmul.bf16.gmra.mxu0 %v412
      %v637 = vpop.f32.mrf.mxu0
      %v638 = vadd.f32 %v256, %v637
      %v639 = vpop.f32.mrf.mxu0
      %v640 = vadd.f32 %v256, %v639
      %641 = vmatmul.bf16.gmra.mxu0 %v413
      %v642 = vpop.f32.mrf.mxu0
      %v643 = vadd.f32 %v256, %v642
      %v644 = vpop.f32.mrf.mxu0
      %v645 = vadd.f32 %v256, %v644
      %646 = vmatmul.bf16.gmra.mxu0 %v414
      %v647 = vpop.f32.mrf.mxu0
      %v648 = vadd.f32 %v256, %v647
      %v649 = vpop.f32.mrf.mxu0
      %v650 = vadd.f32 %v256, %v649
      %651 = vmatmul.bf16.gmra.mxu0 %v415
      %v652 = vpop.f32.mrf.mxu0
      %v653 = vadd.f32 %v256, %v652
      %v654 = vpop.f32.mrf.mxu0
      %v655 = vadd.f32 %v256, %v654
      %656 = vmatmul.bf16.gmra.mxu0 %v416
      %v657 = vpop.f32.mrf.mxu0
      %v658 = vadd.f32 %v256, %v657
      %v659 = vpop.f32.mrf.mxu0
      %v660 = vadd.f32 %v256, %v659
      %661 = vmatmul.bf16.gmra.mxu0 %v417
      %v662 = vpop.f32.mrf.mxu0
      %v663 = vadd.f32 %v256, %v662
      %v664 = vpop.f32.mrf.mxu0
      %v665 = vadd.f32 %v256, %v664
      %666 = vdwg.mxu0
      %v667 = vtanh.pop %v508
      %v668 = vtanh.pop %v510
      %v669 = vtanh.pop %v513
      %v670 = vtanh.pop %v515
      %v671 = vtanh.pop %v518
      %v672 = vtanh.pop %v520
      %v673 = vtanh.pop %v523
      %v674 = vtanh.pop %v525
      %v675 = vtanh.pop %v528
      %v676 = vtanh.pop %v530
      %v677 = vtanh.pop %v533
      %v678 = vtanh.pop %v535
      %v679 = vtanh.pop %v538
      %v680 = vtanh.pop %v540
      %v681 = vtanh.pop %v543
      %v682 = vtanh.pop %v545
      %v683 = vtanh.pop %v548
      %v684 = vtanh.pop %v550
      %v685 = vtanh.pop %v553
      %v686 = vtanh.pop %v555
      %v687 = vtanh.pop %v558
      %v688 = vtanh.pop %v560
      %v689 = vtanh.pop %v563
      %v690 = vtanh.pop %v565
      %v691 = vtanh.pop %v568
      %v692 = vtanh.pop %v570
      %v693 = vtanh.pop %v573
      %v694 = vtanh.pop %v575
      %v695 = vtanh.pop %v578
      %v696 = vtanh.pop %v580
      %v697 = vtanh.pop %v583
      %v698 = vtanh.pop %v585
      %v699 = vtanh.pop %v588
      %v700 = vtanh.pop %v590
      %v701 = vtanh.pop %v593
      %v702 = vtanh.pop %v595
      %v703 = vtanh.pop %v598
      %v704 = vtanh.pop %v600
      %v705 = vtanh.pop %v603
      %v706 = vtanh.pop %v605
      %v707 = vtanh.pop %v608
      %v708 = vtanh.pop %v610
      %v709 = vtanh.pop %v613
      %v710 = vtanh.pop %v615
      %v711 = vtanh.pop %v618
      %v712 = vtanh.pop %v620
      %v713 = vtanh.pop %v623
      %v714 = vtanh.pop %v625
      %v715 = vtanh.pop %v628
      %v716 = vtanh.pop %v630
      %v717 = vtanh.pop %v633
      %v718 = vtanh.pop %v635
      %v719 = vtanh.pop %v638
      %v720 = vtanh.pop %v640
      %v721 = vtanh.pop %v643
      %v722 = vtanh.pop %v645
      %v723 = vtanh.pop %v648
      %v724 = vtanh.pop %v650
      %v725 = vtanh.pop %v653
      %v726 = vtanh.pop %v655
      %v727 = vtanh.pop %v658
      %v728 = vtanh.pop %v660
      %v729 = vtanh.pop %v663
      %v730 = vtanh.pop %v665
      %731 = vst [vmem:[%s172] sm:$0xff] %v667
      %732 = vst [vmem:[%s172 + $0x8] sm:$0xff] %v668
      %733 = vst [vmem:[%s172 + $0x10] sm:$0xff] %v669
      %734 = vst [vmem:[%s172 + $0x18] sm:$0xff] %v670
      %735 = vst [vmem:[%s172 + $0x20] sm:$0xff] %v671
      %736 = vst [vmem:[%s172 + $0x28] sm:$0xff] %v672
      %737 = vst [vmem:[%s172 + $0x30] sm:$0xff] %v673
      %738 = vst [vmem:[%s172 + $0x38] sm:$0xff] %v674
      %739 = vst [vmem:[%s172 + $0x40] sm:$0xff] %v675
      %740 = vst [vmem:[%s172 + $0x48] sm:$0xff] %v676
      %741 = vst [vmem:[%s172 + $0x50] sm:$0xff] %v677
      %742 = vst [vmem:[%s172 + $0x58] sm:$0xff] %v678
      %743 = vst [vmem:[%s172 + $0x60] sm:$0xff] %v679
      %744 = vst [vmem:[%s172 + $0x68] sm:$0xff] %v680
      %745 = vst [vmem:[%s172 + $0x70] sm:$0xff] %v681
      %746 = vst [vmem:[%s172 + $0x78] sm:$0xff] %v682
      %747 = vst [vmem:[%s172 + $0x80] sm:$0xff] %v683
      %748 = vst [vmem:[%s172 + $0x88] sm:$0xff] %v684
      %749 = vst [vmem:[%s172 + $0x90] sm:$0xff] %v685
      %750 = vst [vmem:[%s172 + $0x98] sm:$0xff] %v686
      %751 = vst [vmem:[%s172 + $0xa0] sm:$0xff] %v687
      %752 = vst [vmem:[%s172 + $0xa8] sm:$0xff] %v688
      %753 = vst [vmem:[%s172 + $0xb0] sm:$0xff] %v689
      %754 = vst [vmem:[%s172 + $0xb8] sm:$0xff] %v690
      %755 = vst [vmem:[%s172 + $0xc0] sm:$0xff] %v691
      %756 = vst [vmem:[%s172 + $0xc8] sm:$0xff] %v692
      %757 = vst [vmem:[%s172 + $0xd0] sm:$0xff] %v693
      %758 = vst [vmem:[%s172 + $0xd8] sm:$0xff] %v694
      %759 = vst [vmem:[%s172 + $0xe0] sm:$0xff] %v695
      %760 = vst [vmem:[%s172 + $0xe8] sm:$0xff] %v696
      %761 = vst [vmem:[%s172 + $0xf0] sm:$0xff] %v697
      %762 = vst [vmem:[%s172 + $0xf8] sm:$0xff] %v698
      %763 = vst [vmem:[%s172 + $0x100] sm:$0xff] %v699
      %764 = vst [vmem:[%s172 + $0x108] sm:$0xff] %v700
      %765 = vst [vmem:[%s172 + $0x110] sm:$0xff] %v701
      %766 = vst [vmem:[%s172 + $0x118] sm:$0xff] %v702
      %767 = vst [vmem:[%s172 + $0x120] sm:$0xff] %v703
      %768 = vst [vmem:[%s172 + $0x128] sm:$0xff] %v704
      %769 = vst [vmem:[%s172 + $0x130] sm:$0xff] %v705
      %770 = vst [vmem:[%s172 + $0x138] sm:$0xff] %v706
      %771 = vst [vmem:[%s172 + $0x140] sm:$0xff] %v707
      %772 = vst [vmem:[%s172 + $0x148] sm:$0xff] %v708
      %773 = vst [vmem:[%s172 + $0x150] sm:$0xff] %v709
      %774 = vst [vmem:[%s172 + $0x158] sm:$0xff] %v710
      %775 = vst [vmem:[%s172 + $0x160] sm:$0xff] %v711
      %776 = vst [vmem:[%s172 + $0x168] sm:$0xff] %v712
      %777 = vst [vmem:[%s172 + $0x170] sm:$0xff] %v713
      %778 = vst [vmem:[%s172 + $0x178] sm:$0xff] %v714
      %779 = vst [vmem:[%s172 + $0x180] sm:$0xff] %v715
      %780 = vst [vmem:[%s172 + $0x188] sm:$0xff] %v716
      %781 = vst [vmem:[%s172 + $0x190] sm:$0xff] %v717
      %782 = vst [vmem:[%s172 + $0x198] sm:$0xff] %v718
      %783 = vst [vmem:[%s172 + $0x1a0] sm:$0xff] %v719
      %784 = vst [vmem:[%s172 + $0x1a8] sm:$0xff] %v720
      %785 = vst [vmem:[%s172 + $0x1b0] sm:$0xff] %v721
      %786 = vst [vmem:[%s172 + $0x1b8] sm:$0xff] %v722
      %787 = vst [vmem:[%s172 + $0x1c0] sm:$0xff] %v723
      %788 = vst [vmem:[%s172 + $0x1c8] sm:$0xff] %v724
      %789 = vst [vmem:[%s172 + $0x1d0] sm:$0xff] %v725
      %790 = vst [vmem:[%s172 + $0x1d8] sm:$0xff] %v726
      %791 = vst [vmem:[%s172 + $0x1e0] sm:$0xff] %v727
      %792 = vst [vmem:[%s172 + $0x1e8] sm:$0xff] %v728
      %793 = vst [vmem:[%s172 + $0x1f0] sm:$0xff] %v729
      %794 = vst [vmem:[%s172 + $0x1f8] sm:$0xff] %v730
      %s795 = smul.u32 64, %s14
      %p796 = scmp.lt.s32.totalorder %s795, 127
      %s797 = scalar_select %p796, %s795, 127
      %s798 = smul.addr %s797, 8
      %s799 = scalar_lea.vmem %s3, %s798
      // Predicated region
      $region33: #{unet_forward.9} parent=31 // pred_check
        %p800 = pneg %p100
      $region34: #{unet_forward.9} parent=31 // pred_check_branch
        %802 = sbr.rel (%p800) target = $region36
      $region35: #{unet_forward.9} parent=31 // pred_region
        %s803 = smul.u32 64, %s14
      $region36: #{unet_forward.9} parent=31 // pred_fallthru
        _
    $region32: #{unet_forward.9} parent=5 // pred_fallthru
      _
    %p804 = scmp.le.s32.totalorder 2, %s9
    // Predicated region
    $region37: #{unet_forward.9} parent=5 // pred_check
      %p805 = pneg %p804
    $region38: #{unet_forward.9} parent=5 // pred_check_branch
      %807 = sbr.rel (%p805) target = $region40
    $region39: #{unet_forward.9} parent=5 // pred_region
      %s808 = ssub.s32 %s9, 2
      // Predicated region
      $region41: #{unet_forward.9} parent=39 // pred_check
        %p809 = pneg %p106
      $region42: #{unet_forward.9} parent=39 // pred_check_branch
        %811 = sbr.rel (%p809) target = $region44
      $region43: #{unet_forward.9} parent=39 // pred_region
        %s812 = smul.u32 64, %s15
        %p813 = scmp.lt.s32.totalorder %s812, 127
        %s814 = scalar_select %p813, %s812, 127
        %s815 = smul.addr %s814, 8
        %s816 = scalar_lea.vmem %s3, %s815
      $region44: #{unet_forward.9} parent=39 // pred_fallthru
        _
    $region40: #{unet_forward.9} parent=5 // pred_fallthru
      _
  $region6: #{unet_forward.9} parent=0 // loop_footer
    %s13 = sadd.s32 1, %s9
  $region7: #{unet_forward.9} parent=0 // loop_footer_branch
    %8 = sbr.rel target = $region3
  $region8: #{unet_forward.9} parent=0 // loop_exit
    _

</llo_original>
